<compile_context>
chip_gen: v6e
topology: v6e:2x2x1
jax: 0.10.0
libtpu: 0.0.40
codegen_flags: <defaults>
</compile_context>

<pallas_src>
import jax
import jax.numpy as jnp
from jax import lax
from jax.experimental import pallas as pl
from jax.experimental.pallas import tpu as pltpu

LN_EPS = 1e-5
_TILE_CANDIDATES = (8192, 4096, 2048, 1024, 512, 256, 128, 64, 32, 16, 8)


def _round_up(x, m):
    return ((x + m - 1) // m) * m


def _cdiv(a, b):
    return (a + b - 1) // b


def _pad2(x, rows, cols, dtype=jnp.float32):
    """Zero-pad a 2-D array up to (rows, cols) and cast."""
    x = jnp.asarray(x, dtype)
    r, c = x.shape
    if r == rows and c == cols:
        return x
    return jnp.pad(x, ((0, rows - r), (0, cols - c)))


def _vmem_tile_bytes(shape, itemsize):
    """Bytes a 2-D block occupies in VMEM (sublane pad to 8, lane pad to 128)."""
    r = shape[-2] if len(shape) >= 2 else 1
    c = shape[-1]
    return _round_up(max(r, 1), 8) * _round_up(max(c, 1), 128) * itemsize


def _vmem_budget_and_limit():
    """Generation-aware VMEM tile budget and scoped-vmem limit (bytes)."""
    cap = 64 * 1024 * 1024                      # conservative default (v7x per-TC)
    try:
        info = pltpu.get_tpu_info()
        c = getattr(info, "vmem_capacity_bytes", None)
        if c:
            cap = int(c)
    except Exception:
        pass
    limit = int(min(cap * 0.80, cap - (8 << 20)))   # ~100 MiB on v5e/v6e, ~51 MiB on v7x
    limit = max(limit, 32 << 20)
    budget = max(limit - (8 << 20), 24 << 20)
    return budget, limit


def _choose_tile_rows(E, in_widths, in_itemsize, h_pad, n_out, out_itemsize,
                      param_vmem_bytes, budget_bytes, min_grid_steps=2):
    """Largest row tile that fits the VMEM budget, capped so grid >= min_grid_steps."""
    cap = max(8, _round_up(_cdiv(E, max(min_grid_steps, 1)), 8))
    in_cols = sum(_round_up(w, 128) for w in in_widths)   # VMEM lane-pads each to 128
    out_cols = _round_up(n_out, 128)
    for t in _TILE_CANDIDATES:
        if t > cap:
            continue
        io = 2 * t * (in_cols * in_itemsize + out_cols * out_itemsize)  # double-buffered
        tmp = 6 * t * max(h_pad, 128) * 4                               # f32 temporaries
        if io + tmp + param_vmem_bytes <= budget_bytes:
            return t
    return 8


def _param_spec(shape, single_buffer):
    """BlockSpec for a grid-invariant (broadcast) parameter block."""
    zeros = (0,) * len(shape)
    index_map = lambda i, _z=zeros: _z
    if single_buffer:
        # Parameters are reused every grid step; double-buffering them wastes VMEM.
        return pl.BlockSpec(shape, index_map, pipeline_mode=pl.Buffered(1))
    return pl.BlockSpec(shape, index_map)


# ----------------------------------------------------------------------------
# Kernel body
# ----------------------------------------------------------------------------
def _make_edge_mlp_kernel(n_inputs, n_layers, n_hidden, h_pad, mm_dtype):
    """Fused (Linear -> LayerNorm -> SiLU) x n_layers -> Linear kernel."""
    inv_h = 1.0 / float(n_hidden)
    need_mask = (h_pad != n_hidden)

    def ln_silu(h, b, gamma, beta, lane_ok):
        # h padded lanes are exactly 0 on entry (zero-padded W cols & biases).
        h = h + b
        mu = jnp.sum(h, axis=-1, keepdims=True) * inv_h          # exact mean (pads = 0)
        d = h - mu
        if lane_ok is not None:
            d = jnp.where(lane_ok, d, 0.0)        # zero padded lanes -> exact variance
        var = jnp.sum(d * d, axis=-1, keepdims=True) * inv_h
        h = d * lax.rsqrt(var + LN_EPS)
        h = h * gamma + beta                      # gamma/beta zero-padded -> pads stay 0
        # SiLU: x*sigmoid(x) == 0.5*x*(1+tanh(x/2))  (1 EUP op, f32, v5e-safe)
        return h * (0.5 + 0.5 * jnp.tanh(0.5 * h))

    def kernel(*refs):
        in_refs = refs[:n_inputs]
        o_ref = refs[-1]
        p = refs[n_inputs:-1]
        w0 = p[:n_inputs]                              # layer-0 weight (split per input)
        wh = p[n_inputs:n_inputs + (n_layers - 1)]     # hidden weights
        wf = p[n_inputs + n_layers - 1]                # output weight (h_pad, n_out)
        lnb_ref = p[n_inputs + n_layers]               # (3*n_layers, h_pad) b/gamma/beta
        bf = p[n_inputs + n_layers + 1]                # (1, n_out)

        lane_ok = None
        if need_mask:
            lane_ok = lax.broadcasted_iota(jnp.int32, (1, h_pad), 1) < n_hidden

        # ---- layer 0: concat fused as sum of per-input matmuls (usually 1) ----
        acc = None
        for r, w in zip(in_refs, w0):
            part = jnp.dot(r[...].astype(mm_dtype), w[...],
                           preferred_element_type=jnp.float32)
            acc = part if acc is None else acc + part
        h = ln_silu(acc, lnb_ref[0:1, :], lnb_ref[1:2, :], lnb_ref[2:3, :], lane_ok)

        # ---- hidden layers (Dropout(p=0.3) is identity at inference) ----
        for l in range(n_layers - 1):
            h = jnp.dot(h.astype(mm_dtype), wh[l][...],
                        preferred_element_type=jnp.float32)
            r0 = 3 * (l + 1)
            h = ln_silu(h, lnb_ref[r0:r0 + 1, :], lnb_ref[r0 + 1:r0 + 2, :],
                        lnb_ref[r0 + 2:r0 + 3, :], lane_ok)

        # ---- output projection at TRUE width (no padded-lane writeback) ----
        o_ref[...] = (jnp.dot(h.astype(mm_dtype), wf[...],
                              preferred_element_type=jnp.float32)
                      + bf[...]).astype(o_ref.dtype)

    return kernel


# ----------------------------------------------------------------------------
# Parameter preparation (cacheable across forward calls)
# ----------------------------------------------------------------------------
def prepare_edge_model_params(params, node_in, edge_in, hidden_size, edge_out,
                              n_layers, global_in=0, use_bf16=True):
    """Pad/cast parameters once; reuse the result across inference calls.

    Padding invariants (required for correctness of the padded hidden dim):
      * weight columns >= hidden_size are exactly zero,
      * bias/gamma/beta columns >= hidden_size are exactly zero,
    so padded lanes of h stay exactly 0 through every layer (the kernel also
    re-zeroes them before the variance reduction as a belt-and-braces measure).
    """
    mm_dtype = jnp.bfloat16 if use_bf16 else jnp.float32
    widths = [node_in, node_in, edge_in] + ([global_in] if global_in else [])
    # Keep the per-input split only when every input is already lane-dense.
    split = min(widths) >= 128
    kern_widths = list(widths) if split else [sum(widths)]

    h_pad = _round_up(hidden_size, 128)

    weights = []
    W0 = jnp.asarray(params[0])
    off = 0
    for w in kern_widths:
        weights.append(_pad2(W0[off:off + w], w, h_pad, dtype=mm_dtype))
        off += w

    lnb_rows = [_pad2(params[1], 1, h_pad), _pad2(params[2], 1, h_pad),
                _pad2(params[3], 1, h_pad)]
    idx = 4
    for _ in range(n_layers - 1):
        W, b, g, be = params[idx:idx + 4]
        idx += 4
        weights.append(_pad2(W, h_pad, h_pad, dtype=mm_dtype))
        lnb_rows += [_pad2(b, 1, h_pad), _pad2(g, 1, h_pad), _pad2(be, 1, h_pad)]

    Wf, bf = params[idx], params[idx + 1]
    weights.append(_pad2(Wf, h_pad, edge_out, dtype=mm_dtype))   # true output width

    # Pack per-layer (bias, gamma, beta) into ONE (3*n_layers, h_pad) block:
    # one DMA descriptor / one VMEM tile instead of 3*n_layers tiny blocks.
    lnb = jnp.concatenate(lnb_rows, axis=0)
    bf = jnp.asarray(bf, jnp.float32).reshape(1, edge_out)

    return {
        "params": weights + [lnb, bf],
        "kern_widths": kern_widths,
        "split": split,
        "h_pad": h_pad,
        "mm_dtype": mm_dtype,
        "use_bf16": use_bf16,
    }


# ----------------------------------------------------------------------------
# EdgeModel forward
# ----------------------------------------------------------------------------
def edge_model_forward(src, dst, edge_attr, u, batch, params,
                       node_in, edge_in, hidden_size, edge_out, n_layers,
                       global_in=0, use_bf16=True, out_dtype=jnp.float32,
                       tile_rows=None, prepared=None, single_buffer_params=True):
    if prepared is None:
        prepared = prepare_edge_model_params(
            params, node_in, edge_in, hidden_size, edge_out, n_layers,
            global_in, use_bf16)

    mm_dtype = prepared["mm_dtype"]
    use_bf16 = prepared["use_bf16"]
    kern_widths = prepared["kern_widths"]
    h_pad = prepared["h_pad"]
    plist = prepared["params"]

    inputs = [src, dst, edge_attr]
    if u is not None and global_in != 0:
        # TODO(synk): gather u[batch] inside the kernel (scalar-prefetched `batch`
        # + in-kernel jnp.take / pl.Element row map) to avoid materializing the
        # (E, global_in) gather in HBM.
        inputs.append(u[batch])

    act_dtype = mm_dtype if use_bf16 else jnp.float32
    inputs = [x.astype(act_dtype) for x in inputs]          # bf16 halves input HBM read
    if not prepared["split"]:
        # One lane-dense layer-0 matmul instead of 3-4 K=8 split matmuls.
        inputs = [jnp.concatenate(inputs, axis=1)] if len(inputs) > 1 else inputs

    E = src.shape[0]
    budget, vmem_limit = _vmem_budget_and_limit()
    param_vmem = sum(_vmem_tile_bytes(p.shape, p.dtype.itemsize) for p in plist)
    if tile_rows is None:
        tile_rows = _choose_tile_rows(
            E, kern_widths, jnp.dtype(act_dtype).itemsize, h_pad,
            edge_out, jnp.dtype(out_dtype).itemsize,
            2 * param_vmem, budget)                          # 2x: conservative vs fallback

    # No jnp.pad of rows: Pallas handles the partial last block (rows never mix).
    grid = (_cdiv(E, tile_rows),)

    kernel = _make_edge_mlp_kernel(len(inputs), n_layers, hidden_size, h_pad, mm_dtype)

    d_in_total = sum(kern_widths)
    flops = 2 * E * (d_in_total * hidden_size
                     + (n_layers - 1) * hidden_size * hidden_size
                     + hidden_size * edge_out)
    bytes_in = sum(int(x.size) * x.dtype.itemsize for x in inputs)
    bytes_par = sum(int(p.size) * p.dtype.itemsize for p in plist)
    bytes_out = E * edge_out * jnp.dtype(out_dtype).itemsize
    cost = pl.CostEstimate(flops=flops,
                           transcendentals=E * hidden_size * n_layers,   # tanh in SiLU
                           bytes_accessed=bytes_in + bytes_par + bytes_out)

    def _call(single_buffer):
        in_specs = [pl.BlockSpec((tile_rows, w), lambda i: (i, 0))
                    for w in kern_widths]
        in_specs += [_param_spec(p.shape, single_buffer) for p in plist]
        out_spec = pl.BlockSpec((tile_rows, edge_out), lambda i: (i, 0))
        return pl.pallas_call(
            kernel,
            out_shape=jax.ShapeDtypeStruct((E, edge_out), out_dtype),
            grid_spec=pltpu.PrefetchScalarGridSpec(
                num_scalar_prefetch=0,
                grid=grid,
                in_specs=in_specs,
                out_specs=out_spec,
            ),
            compiler_params=pltpu.CompilerParams(
                dimension_semantics=("parallel",),
                vmem_limit_bytes=int(vmem_limit),
            ),
            cost_estimate=cost,
        )(*inputs, *plist)

    if single_buffer_params:
        try:
            return _call(True)
        except Exception:
            # pipeline_mode=pl.Buffered(1) unsupported on this Pallas version;
            # fall back to default (double) buffering for the parameter blocks.
            pass
    return _call(False)


# ----------------------------------------------------------------------------
# Deterministic parameter init (shapes per MLP_block.__init__, W pre-transposed)
# ----------------------------------------------------------------------------
def init_params(key, n_inp, n_out, n_hidden, n_layers):
    params = []
    dims_in = n_inp
    for _ in range(n_layers):
        key, kw, kb = jax.random.split(key, 3)
        W = jax.random.normal(kw, (dims_in, n_hidden), jnp.float32) * 0.1
        b = jax.random.normal(kb, (1, n_hidden), jnp.float32) * 0.01
        gamma = jnp.ones((1, n_hidden), jnp.float32)
        beta = jnp.zeros((1, n_hidden), jnp.float32)
        params += [W, b, gamma, beta]
        dims_in = n_hidden
    key, kw, kb = jax.random.split(key, 3)
    Wf = jax.random.normal(kw, (dims_in, n_out), jnp.float32) * 0.1
    bf = jax.random.normal(kb, (1, n_out), jnp.float32) * 0.01
    params += [Wf, bf]
    return params


# Pure-JAX reference (two-pass LayerNorm, sigmoid-form SiLU, f32 everywhere).
def edge_model_ref(src, dst, edge_attr, u, batch, params, n_layers, global_in=0):
    to_cat = [src, dst, edge_attr]
    if u is not None and global_in != 0:
        to_cat.append(u[batch])
    h = jnp.concatenate(to_cat, axis=1)
    idx = 0
    for _ in range(n_layers):
        W, b, g, beta = params[idx:idx + 4]
        idx += 4
        h = h @ W + b
        mu = jnp.mean(h, axis=-1, keepdims=True)
        var = jnp.mean((h - mu) ** 2, axis=-1, keepdims=True)
        h = (h - mu) / jnp.sqrt(var + LN_EPS)
        h = h * g + beta
        h = h * jax.nn.sigmoid(h)
    Wf, bf = params[idx], params[idx + 1]
    return h @ Wf + bf


if __name__ == "__main__":
    # Small shapes: E=20 edges (deliberately NOT a multiple of the row tile, to
    # exercise the partial-last-block path), node_in=8, edge_in=8, hidden=32,
    # edge_out=8, n_layers=2, global_in=0 (u/batch unused, matching the default).
    E, node_in, edge_in = 20, 8, 8
    hidden_size, edge_out, n_layers = 32, 8, 2
    global_in = 0

    key = jax.random.PRNGKey(0)
    k_src, k_dst, k_e, k_p = jax.random.split(key, 4)
    src = jax.random.normal(k_src, (E, node_in), jnp.float32)
    dst = jax.random.normal(k_dst, (E, node_in), jnp.float32)
    edge_attr = jax.random.normal(k_e, (E, edge_in), jnp.float32)
    u, batch = None, None

    n_inp = edge_in + 2 * node_in + global_in
    params = init_params(k_p, n_inp, edge_out, hidden_size, n_layers)

    ref = edge_model_ref(src, dst, edge_attr, u, batch, params, n_layers, global_in)

    # f32 matmul path (exact vs reference).
    out_f32 = edge_model_forward(src, dst, edge_attr, u, batch, params,
                                 node_in, edge_in, hidden_size, edge_out,
                                 n_layers, global_in, use_bf16=False)
    out_f32 = jax.block_until_ready(out_f32)
    assert out_f32.shape == (E, edge_out)
    assert jnp.allclose(out_f32, ref, atol=1e-4, rtol=1e-4), \
        "f32 kernel mismatch vs JAX reference"

    # bf16 matmul path (fast MXU path on v5e/v6e/v7x; f32 accumulate + f32 LN/SiLU),
    # with the padded/cast parameters prepared once and reused (caching API).
    prep_bf16 = prepare_edge_model_params(params, node_in, edge_in, hidden_size,
                                          edge_out, n_layers, global_in,
                                          use_bf16=True)
    out_bf16 = edge_model_forward(src, dst, edge_attr, u, batch, params,
                                  node_in, edge_in, hidden_size, edge_out,
                                  n_layers, global_in, use_bf16=True,
                                  prepared=prep_bf16)
    out_bf16 = jax.block_until_ready(out_bf16)
    assert out_bf16.shape == (E, edge_out)
    assert jnp.allclose(out_bf16, ref, atol=1e-1, rtol=1e-1), \
        "bf16 kernel mismatch vs JAX reference"

    # TODO(synk): Dropout(p=0.3) is modeled as eval-mode identity; training-mode
    # dropout would need pltpu.prng_seed/prng_random_bits inside the kernel.
    print("KERNEL_OK")
</pallas_src>

<mosaic_0001>
module attributes {stable_mosaic.version = 11 : i64} {
  func.func @kernel(%arg0: i32, %arg1: memref<16x24xf32, #tpu.memory_space<vmem>>, %arg2: memref<24x128xf32, #tpu.memory_space<vmem>>, %arg3: memref<128x128xf32, #tpu.memory_space<vmem>>, %arg4: memref<128x8xf32, #tpu.memory_space<vmem>>, %arg5: memref<6x128xf32, #tpu.memory_space<vmem>>, %arg6: memref<1x8xf32, #tpu.memory_space<vmem>>, %arg7: memref<16x8xf32, #tpu.memory_space<vmem>>) attributes {dimension_semantics = [#tpu.dimension_semantics<parallel>], iteration_bounds = array<i64: 2>, scalar_prefetch = 0 : i64, scratch_operands = 0 : i64, tpu.core_type = #tpu.core_type<tc>, window_params = [{transform_indices = @transform_0, window_bounds = array<i64: 16, 24>}, {pipeline_mode = #tpu.pipeline_mode<synchronous>, transform_indices = @transform_1, window_bounds = array<i64: 24, 128>}, {pipeline_mode = #tpu.pipeline_mode<synchronous>, transform_indices = @transform_2, window_bounds = array<i64: 128, 128>}, {pipeline_mode = #tpu.pipeline_mode<synchronous>, transform_indices = @transform_3, window_bounds = array<i64: 128, 8>}, {pipeline_mode = #tpu.pipeline_mode<synchronous>, transform_indices = @transform_4, window_bounds = array<i64: 6, 128>}, {pipeline_mode = #tpu.pipeline_mode<synchronous>, transform_indices = @transform_5, window_bounds = array<i64: 1, 8>}, {transform_indices = @transform_6, window_bounds = array<i64: 16, 8>}]} {
    %0 = tpu.iota {dimensions = array<i32: 1>} : vector<1x128xi32>
    %c32_i32 = arith.constant 32 : i32
    %1 = vector.broadcast %c32_i32 : i32 to vector<1x128xi32>
    %2 = arith.cmpi slt, %0, %1 : vector<1x128xi32>
    %c0 = arith.constant 0 : index
    %c0_0 = arith.constant 0 : index
    %3 = vector.load %arg1[%c0, %c0_0] : memref<16x24xf32, #tpu.memory_space<vmem>>, vector<16x24xf32>
    %c0_1 = arith.constant 0 : index
    %c0_2 = arith.constant 0 : index
    %4 = vector.load %arg2[%c0_1, %c0_2] : memref<24x128xf32, #tpu.memory_space<vmem>>, vector<24x128xf32>
    %cst = arith.constant dense<0.000000e+00> : vector<16x128xf32>
    %5 = tpu.matmul %3, %4, %cst {dimension_numbers = #tpu.dot_dimension_numbers<[1], [0], [0], [1], [0, 0, 1, 1], [], []>} : vector<16x24xf32>, vector<24x128xf32>, vector<16x128xf32> -> vector<16x128xf32>
    %c0_3 = arith.constant 0 : index
    %c0_4 = arith.constant 0 : index
    %6 = vector.load %arg5[%c0_3, %c0_4] : memref<6x128xf32, #tpu.memory_space<vmem>>, vector<1x128xf32>
    %c1 = arith.constant 1 : index
    %c0_5 = arith.constant 0 : index
    %7 = vector.load %arg5[%c1, %c0_5] : memref<6x128xf32, #tpu.memory_space<vmem>>, vector<1x128xf32>
    %c2 = arith.constant 2 : index
    %c0_6 = arith.constant 0 : index
    %8 = vector.load %arg5[%c2, %c0_6] : memref<6x128xf32, #tpu.memory_space<vmem>>, vector<1x128xf32>
    %9 = vector.broadcast %6 : vector<1x128xf32> to vector<16x128xf32>
    %10 = arith.addf %5, %9 : vector<16x128xf32>
    %cst_7 = arith.constant dense<0.000000e+00> : vector<16xf32>
    %11 = vector.multi_reduction <add>, %10, %cst_7 [1] : vector<16x128xf32> to vector<16xf32>
    %12 = vector.shape_cast %11 : vector<16xf32> to vector<16x1xf32>
    %cst_8 = arith.constant 3.125000e-02 : f32
    %13 = vector.broadcast %cst_8 : f32 to vector<16x1xf32>
    %14 = arith.mulf %12, %13 : vector<16x1xf32>
    %15 = vector.broadcast %14 : vector<16x1xf32> to vector<16x128xf32>
    %16 = arith.subf %10, %15 : vector<16x128xf32>
    %cst_9 = arith.constant 0.000000e+00 : f32
    %17 = vector.shape_cast %2 : vector<1x128xi1> to vector<1x128xi1>
    %18 = vector.broadcast %17 : vector<1x128xi1> to vector<16x128xi1>
    %19 = vector.broadcast %cst_9 : f32 to vector<16x128xf32>
    %20 = arith.select %18, %16, %19 : vector<16x128xi1>, vector<16x128xf32>
    %21 = arith.mulf %20, %20 : vector<16x128xf32>
    %cst_10 = arith.constant dense<0.000000e+00> : vector<16xf32>
    %22 = vector.multi_reduction <add>, %21, %cst_10 [1] : vector<16x128xf32> to vector<16xf32>
    %23 = vector.shape_cast %22 : vector<16xf32> to vector<16x1xf32>
    %cst_11 = arith.constant 3.125000e-02 : f32
    %24 = vector.broadcast %cst_11 : f32 to vector<16x1xf32>
    %25 = arith.mulf %23, %24 : vector<16x1xf32>
    %cst_12 = arith.constant 9.99999974E-6 : f32
    %26 = vector.broadcast %cst_12 : f32 to vector<16x1xf32>
    %27 = arith.addf %25, %26 : vector<16x1xf32>
    %28 = math.rsqrt %27 : vector<16x1xf32>
    %29 = vector.broadcast %28 : vector<16x1xf32> to vector<16x128xf32>
    %30 = arith.mulf %20, %29 : vector<16x128xf32>
    %31 = vector.broadcast %7 : vector<1x128xf32> to vector<16x128xf32>
    %32 = arith.mulf %30, %31 : vector<16x128xf32>
    %33 = vector.broadcast %8 : vector<1x128xf32> to vector<16x128xf32>
    %34 = arith.addf %32, %33 : vector<16x128xf32>
    %cst_13 = arith.constant 5.000000e-01 : f32
    %35 = vector.broadcast %cst_13 : f32 to vector<16x128xf32>
    %36 = arith.mulf %35, %34 : vector<16x128xf32>
    %37 = math.tanh %36 : vector<16x128xf32>
    %cst_14 = arith.constant 5.000000e-01 : f32
    %38 = vector.broadcast %cst_14 : f32 to vector<16x128xf32>
    %39 = arith.mulf %38, %37 : vector<16x128xf32>
    %cst_15 = arith.constant 5.000000e-01 : f32
    %40 = vector.broadcast %cst_15 : f32 to vector<16x128xf32>
    %41 = arith.addf %40, %39 : vector<16x128xf32>
    %42 = arith.mulf %34, %41 : vector<16x128xf32>
    %c0_16 = arith.constant 0 : index
    %c0_17 = arith.constant 0 : index
    %43 = vector.load %arg3[%c0_16, %c0_17] : memref<128x128xf32, #tpu.memory_space<vmem>>, vector<128x128xf32>
    %cst_18 = arith.constant dense<0.000000e+00> : vector<16x128xf32>
    %44 = tpu.matmul %42, %43, %cst_18 {dimension_numbers = #tpu.dot_dimension_numbers<[1], [0], [0], [1], [0, 0, 1, 1], [], []>} : vector<16x128xf32>, vector<128x128xf32>, vector<16x128xf32> -> vector<16x128xf32>
    %c3 = arith.constant 3 : index
    %c0_19 = arith.constant 0 : index
    %45 = vector.load %arg5[%c3, %c0_19] : memref<6x128xf32, #tpu.memory_space<vmem>>, vector<1x128xf32>
    %c4 = arith.constant 4 : index
    %c0_20 = arith.constant 0 : index
    %46 = vector.load %arg5[%c4, %c0_20] : memref<6x128xf32, #tpu.memory_space<vmem>>, vector<1x128xf32>
    %c5 = arith.constant 5 : index
    %c0_21 = arith.constant 0 : index
    %47 = vector.load %arg5[%c5, %c0_21] : memref<6x128xf32, #tpu.memory_space<vmem>>, vector<1x128xf32>
    %48 = vector.broadcast %45 : vector<1x128xf32> to vector<16x128xf32>
    %49 = arith.addf %44, %48 : vector<16x128xf32>
    %cst_22 = arith.constant dense<0.000000e+00> : vector<16xf32>
    %50 = vector.multi_reduction <add>, %49, %cst_22 [1] : vector<16x128xf32> to vector<16xf32>
    %51 = vector.shape_cast %50 : vector<16xf32> to vector<16x1xf32>
    %cst_23 = arith.constant 3.125000e-02 : f32
    %52 = vector.broadcast %cst_23 : f32 to vector<16x1xf32>
    %53 = arith.mulf %51, %52 : vector<16x1xf32>
    %54 = vector.broadcast %53 : vector<16x1xf32> to vector<16x128xf32>
    %55 = arith.subf %49, %54 : vector<16x128xf32>
    %cst_24 = arith.constant 0.000000e+00 : f32
    %56 = vector.shape_cast %2 : vector<1x128xi1> to vector<1x128xi1>
    %57 = vector.broadcast %56 : vector<1x128xi1> to vector<16x128xi1>
    %58 = vector.broadcast %cst_24 : f32 to vector<16x128xf32>
    %59 = arith.select %57, %55, %58 : vector<16x128xi1>, vector<16x128xf32>
    %60 = arith.mulf %59, %59 : vector<16x128xf32>
    %cst_25 = arith.constant dense<0.000000e+00> : vector<16xf32>
    %61 = vector.multi_reduction <add>, %60, %cst_25 [1] : vector<16x128xf32> to vector<16xf32>
    %62 = vector.shape_cast %61 : vector<16xf32> to vector<16x1xf32>
    %cst_26 = arith.constant 3.125000e-02 : f32
    %63 = vector.broadcast %cst_26 : f32 to vector<16x1xf32>
    %64 = arith.mulf %62, %63 : vector<16x1xf32>
    %cst_27 = arith.constant 9.99999974E-6 : f32
    %65 = vector.broadcast %cst_27 : f32 to vector<16x1xf32>
    %66 = arith.addf %64, %65 : vector<16x1xf32>
    %67 = math.rsqrt %66 : vector<16x1xf32>
    %68 = vector.broadcast %67 : vector<16x1xf32> to vector<16x128xf32>
    %69 = arith.mulf %59, %68 : vector<16x128xf32>
    %70 = vector.broadcast %46 : vector<1x128xf32> to vector<16x128xf32>
    %71 = arith.mulf %69, %70 : vector<16x128xf32>
    %72 = vector.broadcast %47 : vector<1x128xf32> to vector<16x128xf32>
    %73 = arith.addf %71, %72 : vector<16x128xf32>
    %cst_28 = arith.constant 5.000000e-01 : f32
    %74 = vector.broadcast %cst_28 : f32 to vector<16x128xf32>
    %75 = arith.mulf %74, %73 : vector<16x128xf32>
    %76 = math.tanh %75 : vector<16x128xf32>
    %cst_29 = arith.constant 5.000000e-01 : f32
    %77 = vector.broadcast %cst_29 : f32 to vector<16x128xf32>
    %78 = arith.mulf %77, %76 : vector<16x128xf32>
    %cst_30 = arith.constant 5.000000e-01 : f32
    %79 = vector.broadcast %cst_30 : f32 to vector<16x128xf32>
    %80 = arith.addf %79, %78 : vector<16x128xf32>
    %81 = arith.mulf %73, %80 : vector<16x128xf32>
    %c0_31 = arith.constant 0 : index
    %c0_32 = arith.constant 0 : index
    %82 = vector.load %arg4[%c0_31, %c0_32] : memref<128x8xf32, #tpu.memory_space<vmem>>, vector<128x8xf32>
    %cst_33 = arith.constant dense<0.000000e+00> : vector<16x8xf32>
    %83 = tpu.matmul %81, %82, %cst_33 {dimension_numbers = #tpu.dot_dimension_numbers<[1], [0], [0], [1], [0, 0, 1, 1], [], []>} : vector<16x128xf32>, vector<128x8xf32>, vector<16x8xf32> -> vector<16x8xf32>
    %c0_34 = arith.constant 0 : index
    %c0_35 = arith.constant 0 : index
    %84 = vector.load %arg6[%c0_34, %c0_35] : memref<1x8xf32, #tpu.memory_space<vmem>>, vector<1x8xf32>
    %85 = vector.broadcast %84 : vector<1x8xf32> to vector<16x8xf32>
    %86 = arith.addf %83, %85 : vector<16x8xf32>
    %c0_36 = arith.constant 0 : index
    %c0_37 = arith.constant 0 : index
    %87 = vector.load %arg7[%c0_36, %c0_37] : memref<16x8xf32, #tpu.memory_space<vmem>>, vector<16x8xf32>
    tpu.vector_store %arg7[%c0_36, %c0_37], %86 {strides = array<i32>} : memref<16x8xf32, #tpu.memory_space<vmem>>, vector<16x8xf32>,
    return
  }
  func.func @transform_0(%arg0: i32) -> (i32, i32) {
    %c0_i32 = arith.constant 0 : i32
    %c0_i32_0 = arith.constant 0 : i32
    return %arg0, %c0_i32 : i32, i32
  }
  func.func @transform_1(%arg0: i32) -> (i32, i32) {
    %c0_i32 = arith.constant 0 : i32
    %c0_i32_0 = arith.constant 0 : i32
    %c0_i32_1 = arith.constant 0 : i32
    return %c0_i32, %c0_i32_0 : i32, i32
  }
  func.func @transform_2(%arg0: i32) -> (i32, i32) {
    %c0_i32 = arith.constant 0 : i32
    %c0_i32_0 = arith.constant 0 : i32
    %c0_i32_1 = arith.constant 0 : i32
    return %c0_i32, %c0_i32_0 : i32, i32
  }
  func.func @transform_3(%arg0: i32) -> (i32, i32) {
    %c0_i32 = arith.constant 0 : i32
    %c0_i32_0 = arith.constant 0 : i32
    %c0_i32_1 = arith.constant 0 : i32
    return %c0_i32, %c0_i32_0 : i32, i32
  }
  func.func @transform_4(%arg0: i32) -> (i32, i32) {
    %c0_i32 = arith.constant 0 : i32
    %c0_i32_0 = arith.constant 0 : i32
    %c0_i32_1 = arith.constant 0 : i32
    return %c0_i32, %c0_i32_0 : i32, i32
  }
  func.func @transform_5(%arg0: i32) -> (i32, i32) {
    %c0_i32 = arith.constant 0 : i32
    %c0_i32_0 = arith.constant 0 : i32
    %c0_i32_1 = arith.constant 0 : i32
    return %c0_i32, %c0_i32_0 : i32, i32
  }
  func.func @transform_6(%arg0: i32) -> (i32, i32) {
    %c0_i32 = arith.constant 0 : i32
    %c0_i32_0 = arith.constant 0 : i32
    return %arg0, %c0_i32 : i32, i32
  }
}

module attributes {stable_mosaic.version = 11 : i64} {
  func.func @kernel(%arg0: i32, %arg1: memref<16x24xf32, #tpu.memory_space<vmem>>, %arg2: memref<24x128xf32, #tpu.memory_space<vmem>>, %arg3: memref<128x128xf32, #tpu.memory_space<vmem>>, %arg4: memref<128x8xf32, #tpu.memory_space<vmem>>, %arg5: memref<6x128xf32, #tpu.memory_space<vmem>>, %arg6: memref<1x8xf32, #tpu.memory_space<vmem>>, %arg7: memref<16x8xf32, #tpu.memory_space<vmem>>) attributes {dimension_semantics = [#tpu.dimension_semantics<parallel>], iteration_bounds = array<i64: 2>, scalar_prefetch = 0 : i64, scratch_operands = 0 : i64, tpu.core_type = #tpu.core_type<tc>, window_params = [{transform_indices = @transform_0, window_bounds = array<i64: 16, 24>}, {pipeline_mode = #tpu.pipeline_mode<synchronous>, transform_indices = @transform_1, window_bounds = array<i64: 24, 128>}, {pipeline_mode = #tpu.pipeline_mode<synchronous>, transform_indices = @transform_2, window_bounds = array<i64: 128, 128>}, {pipeline_mode = #tpu.pipeline_mode<synchronous>, transform_indices = @transform_3, window_bounds = array<i64: 128, 8>}, {pipeline_mode = #tpu.pipeline_mode<synchronous>, transform_indices = @transform_4, window_bounds = array<i64: 6, 128>}, {pipeline_mode = #tpu.pipeline_mode<synchronous>, transform_indices = @transform_5, window_bounds = array<i64: 1, 8>}, {transform_indices = @transform_6, window_bounds = array<i64: 16, 8>}]} {
    %0 = tpu.iota {dimensions = array<i32: 1>} : vector<1x128xi32>
    %c32_i32 = arith.constant 32 : i32
    %1 = vector.broadcast %c32_i32 : i32 to vector<1x128xi32>
    %2 = arith.cmpi slt, %0, %1 : vector<1x128xi32>
    %c0 = arith.constant 0 : index
    %c0_0 = arith.constant 0 : index
    %3 = vector.load %arg1[%c0, %c0_0] : memref<16x24xf32, #tpu.memory_space<vmem>>, vector<16x24xf32>
    %c0_1 = arith.constant 0 : index
    %c0_2 = arith.constant 0 : index
    %4 = vector.load %arg2[%c0_1, %c0_2] : memref<24x128xf32, #tpu.memory_space<vmem>>, vector<24x128xf32>
    %cst = arith.constant dense<0.000000e+00> : vector<16x128xf32>
    %5 = tpu.matmul %3, %4, %cst {dimension_numbers = #tpu.dot_dimension_numbers<[1], [0], [0], [1], [0, 0, 1, 1], [], []>} : vector<16x24xf32>, vector<24x128xf32>, vector<16x128xf32> -> vector<16x128xf32>
    %c0_3 = arith.constant 0 : index
    %c0_4 = arith.constant 0 : index
    %6 = vector.load %arg5[%c0_3, %c0_4] : memref<6x128xf32, #tpu.memory_space<vmem>>, vector<1x128xf32>
    %c1 = arith.constant 1 : index
    %c0_5 = arith.constant 0 : index
    %7 = vector.load %arg5[%c1, %c0_5] : memref<6x128xf32, #tpu.memory_space<vmem>>, vector<1x128xf32>
    %c2 = arith.constant 2 : index
    %c0_6 = arith.constant 0 : index
    %8 = vector.load %arg5[%c2, %c0_6] : memref<6x128xf32, #tpu.memory_space<vmem>>, vector<1x128xf32>
    %9 = vector.broadcast %6 : vector<1x128xf32> to vector<16x128xf32>
    %10 = arith.addf %5, %9 : vector<16x128xf32>
    %cst_7 = arith.constant dense<0.000000e+00> : vector<16xf32>
    %11 = vector.multi_reduction <add>, %10, %cst_7 [1] : vector<16x128xf32> to vector<16xf32>
    %12 = vector.shape_cast %11 : vector<16xf32> to vector<16x1xf32>
    %cst_8 = arith.constant 3.125000e-02 : f32
    %13 = vector.broadcast %cst_8 : f32 to vector<16x1xf32>
    %14 = arith.mulf %12, %13 : vector<16x1xf32>
    %15 = vector.broadcast %14 : vector<16x1xf32> to vector<16x128xf32>
    %16 = arith.subf %10, %15 : vector<16x128xf32>
    %cst_9 = arith.constant 0.000000e+00 : f32
    %17 = vector.shape_cast %2 : vector<1x128xi1> to vector<1x128xi1>
    %18 = vector.broadcast %17 : vector<1x128xi1> to vector<16x128xi1>
    %19 = vector.broadcast %cst_9 : f32 to vector<16x128xf32>
    %20 = arith.select %18, %16, %19 : vector<16x128xi1>, vector<16x128xf32>
    %21 = arith.mulf %20, %20 : vector<16x128xf32>
    %cst_10 = arith.constant dense<0.000000e+00> : vector<16xf32>
    %22 = vector.multi_reduction <add>, %21, %cst_10 [1] : vector<16x128xf32> to vector<16xf32>
    %23 = vector.shape_cast %22 : vector<16xf32> to vector<16x1xf32>
    %cst_11 = arith.constant 3.125000e-02 : f32
    %24 = vector.broadcast %cst_11 : f32 to vector<16x1xf32>
    %25 = arith.mulf %23, %24 : vector<16x1xf32>
    %cst_12 = arith.constant 9.99999974E-6 : f32
    %26 = vector.broadcast %cst_12 : f32 to vector<16x1xf32>
    %27 = arith.addf %25, %26 : vector<16x1xf32>
    %28 = math.rsqrt %27 : vector<16x1xf32>
    %29 = vector.broadcast %28 : vector<16x1xf32> to vector<16x128xf32>
    %30 = arith.mulf %20, %29 : vector<16x128xf32>
    %31 = vector.broadcast %7 : vector<1x128xf32> to vector<16x128xf32>
    %32 = arith.mulf %30, %31 : vector<16x128xf32>
    %33 = vector.broadcast %8 : vector<1x128xf32> to vector<16x128xf32>
    %34 = arith.addf %32, %33 : vector<16x128xf32>
    %cst_13 = arith.constant 5.000000e-01 : f32
    %35 = vector.broadcast %cst_13 : f32 to vector<16x128xf32>
    %36 = arith.mulf %35, %34 : vector<16x128xf32>
    %37 = math.tanh %36 : vector<16x128xf32>
    %cst_14 = arith.constant 5.000000e-01 : f32
    %38 = vector.broadcast %cst_14 : f32 to vector<16x128xf32>
    %39 = arith.mulf %38, %37 : vector<16x128xf32>
    %cst_15 = arith.constant 5.000000e-01 : f32
    %40 = vector.broadcast %cst_15 : f32 to vector<16x128xf32>
    %41 = arith.addf %40, %39 : vector<16x128xf32>
    %42 = arith.mulf %34, %41 : vector<16x128xf32>
    %c0_16 = arith.constant 0 : index
    %c0_17 = arith.constant 0 : index
    %43 = vector.load %arg3[%c0_16, %c0_17] : memref<128x128xf32, #tpu.memory_space<vmem>>, vector<128x128xf32>
    %cst_18 = arith.constant dense<0.000000e+00> : vector<16x128xf32>
    %44 = tpu.matmul %42, %43, %cst_18 {dimension_numbers = #tpu.dot_dimension_numbers<[1], [0], [0], [1], [0, 0, 1, 1], [], []>} : vector<16x128xf32>, vector<128x128xf32>, vector<16x128xf32> -> vector<16x128xf32>
    %c3 = arith.constant 3 : index
    %c0_19 = arith.constant 0 : index
    %45 = vector.load %arg5[%c3, %c0_19] : memref<6x128xf32, #tpu.memory_space<vmem>>, vector<1x128xf32>
    %c4 = arith.constant 4 : index
    %c0_20 = arith.constant 0 : index
    %46 = vector.load %arg5[%c4, %c0_20] : memref<6x128xf32, #tpu.memory_space<vmem>>, vector<1x128xf32>
    %c5 = arith.constant 5 : index
    %c0_21 = arith.constant 0 : index
    %47 = vector.load %arg5[%c5, %c0_21] : memref<6x128xf32, #tpu.memory_space<vmem>>, vector<1x128xf32>
    %48 = vector.broadcast %45 : vector<1x128xf32> to vector<16x128xf32>
    %49 = arith.addf %44, %48 : vector<16x128xf32>
    %cst_22 = arith.constant dense<0.000000e+00> : vector<16xf32>
    %50 = vector.multi_reduction <add>, %49, %cst_22 [1] : vector<16x128xf32> to vector<16xf32>
    %51 = vector.shape_cast %50 : vector<16xf32> to vector<16x1xf32>
    %cst_23 = arith.constant 3.125000e-02 : f32
    %52 = vector.broadcast %cst_23 : f32 to vector<16x1xf32>
    %53 = arith.mulf %51, %52 : vector<16x1xf32>
    %54 = vector.broadcast %53 : vector<16x1xf32> to vector<16x128xf32>
    %55 = arith.subf %49, %54 : vector<16x128xf32>
    %cst_24 = arith.constant 0.000000e+00 : f32
    %56 = vector.shape_cast %2 : vector<1x128xi1> to vector<1x128xi1>
    %57 = vector.broadcast %56 : vector<1x128xi1> to vector<16x128xi1>
    %58 = vector.broadcast %cst_24 : f32 to vector<16x128xf32>
    %59 = arith.select %57, %55, %58 : vector<16x128xi1>, vector<16x128xf32>
    %60 = arith.mulf %59, %59 : vector<16x128xf32>
    %cst_25 = arith.constant dense<0.000000e+00> : vector<16xf32>
    %61 = vector.multi_reduction <add>, %60, %cst_25 [1] : vector<16x128xf32> to vector<16xf32>
    %62 = vector.shape_cast %61 : vector<16xf32> to vector<16x1xf32>
    %cst_26 = arith.constant 3.125000e-02 : f32
    %63 = vector.broadcast %cst_26 : f32 to vector<16x1xf32>
    %64 = arith.mulf %62, %63 : vector<16x1xf32>
    %cst_27 = arith.constant 9.99999974E-6 : f32
    %65 = vector.broadcast %cst_27 : f32 to vector<16x1xf32>
    %66 = arith.addf %64, %65 : vector<16x1xf32>
    %67 = math.rsqrt %66 : vector<16x1xf32>
    %68 = vector.broadcast %67 : vector<16x1xf32> to vector<16x128xf32>
    %69 = arith.mulf %59, %68 : vector<16x128xf32>
    %70 = vector.broadcast %46 : vector<1x128xf32> to vector<16x128xf32>
    %71 = arith.mulf %69, %70 : vector<16x128xf32>
    %72 = vector.broadcast %47 : vector<1x128xf32> to vector<16x128xf32>
    %73 = arith.addf %71, %72 : vector<16x128xf32>
    %cst_28 = arith.constant 5.000000e-01 : f32
    %74 = vector.broadcast %cst_28 : f32 to vector<16x128xf32>
    %75 = arith.mulf %74, %73 : vector<16x128xf32>
    %76 = math.tanh %75 : vector<16x128xf32>
    %cst_29 = arith.constant 5.000000e-01 : f32
    %77 = vector.broadcast %cst_29 : f32 to vector<16x128xf32>
    %78 = arith.mulf %77, %76 : vector<16x128xf32>
    %cst_30 = arith.constant 5.000000e-01 : f32
    %79 = vector.broadcast %cst_30 : f32 to vector<16x128xf32>
    %80 = arith.addf %79, %78 : vector<16x128xf32>
    %81 = arith.mulf %73, %80 : vector<16x128xf32>
    %c0_31 = arith.constant 0 : index
    %c0_32 = arith.constant 0 : index
    %82 = vector.load %arg4[%c0_31, %c0_32] : memref<128x8xf32, #tpu.memory_space<vmem>>, vector<128x8xf32>
    %cst_33 = arith.constant dense<0.000000e+00> : vector<16x8xf32>
    %83 = tpu.matmul %81, %82, %cst_33 {dimension_numbers = #tpu.dot_dimension_numbers<[1], [0], [0], [1], [0, 0, 1, 1], [], []>} : vector<16x128xf32>, vector<128x8xf32>, vector<16x8xf32> -> vector<16x8xf32>
    %c0_34 = arith.constant 0 : index
    %c0_35 = arith.constant 0 : index
    %84 = vector.load %arg6[%c0_34, %c0_35] : memref<1x8xf32, #tpu.memory_space<vmem>>, vector<1x8xf32>
    %85 = vector.broadcast %84 : vector<1x8xf32> to vector<16x8xf32>
    %86 = arith.addf %83, %85 : vector<16x8xf32>
    %c0_36 = arith.constant 0 : index
    %c0_37 = arith.constant 0 : index
    %87 = vector.load %arg7[%c0_36, %c0_37] : memref<16x8xf32, #tpu.memory_space<vmem>>, vector<16x8xf32>
    tpu.vector_store %arg7[%c0_36, %c0_37], %86 {strides = array<i32>} : memref<16x8xf32, #tpu.memory_space<vmem>>, vector<16x8xf32>,
    return
  }
  func.func @transform_0(%arg0: i32) -> (i32, i32) {
    %c0_i32 = arith.constant 0 : i32
    %c0_i32_0 = arith.constant 0 : i32
    return %arg0, %c0_i32 : i32, i32
  }
  func.func @transform_1(%arg0: i32) -> (i32, i32) {
    %c0_i32 = arith.constant 0 : i32
    %c0_i32_0 = arith.constant 0 : i32
    %c0_i32_1 = arith.constant 0 : i32
    return %c0_i32, %c0_i32_0 : i32, i32
  }
  func.func @transform_2(%arg0: i32) -> (i32, i32) {
    %c0_i32 = arith.constant 0 : i32
    %c0_i32_0 = arith.constant 0 : i32
    %c0_i32_1 = arith.constant 0 : i32
    return %c0_i32, %c0_i32_0 : i32, i32
  }
  func.func @transform_3(%arg0: i32) -> (i32, i32) {
    %c0_i32 = arith.constant 0 : i32
    %c0_i32_0 = arith.constant 0 : i32
    %c0_i32_1 = arith.constant 0 : i32
    return %c0_i32, %c0_i32_0 : i32, i32
  }
  func.func @transform_4(%arg0: i32) -> (i32, i32) {
    %c0_i32 = arith.constant 0 : i32
    %c0_i32_0 = arith.constant 0 : i32
    %c0_i32_1 = arith.constant 0 : i32
    return %c0_i32, %c0_i32_0 : i32, i32
  }
  func.func @transform_5(%arg0: i32) -> (i32, i32) {
    %c0_i32 = arith.constant 0 : i32
    %c0_i32_0 = arith.constant 0 : i32
    %c0_i32_1 = arith.constant 0 : i32
    return %c0_i32, %c0_i32_0 : i32, i32
  }
  func.func @transform_6(%arg0: i32) -> (i32, i32) {
    %c0_i32 = arith.constant 0 : i32
    %c0_i32_0 = arith.constant 0 : i32
    return %arg0, %c0_i32 : i32, i32
  }
}

</mosaic_0001>

<llo_original>
// kernel: tpu_custom_call.1
$region0: #{tpu_custom_call.1}
  #allocation0 [shape = 'u32[]', space=smem, size = 0x4, offset = 0x4, fixed_abs, tag = 'smem constant byte address 0x4 - core index']
  #allocation1 [shape = 'u32[144,128]{1,0:T(1,128)}', space=vmem, size = 0x12000, scoped, tag = 'internal scratch']
  %s0 = inlined_call_operand.hbm [shape: f32[20,24], index: 0, kind: input, shape index: {}]
  %s1 = inlined_call_operand.hbm [shape: f32[24,128], index: 1, kind: input, shape index: {}]
  %s2 = inlined_call_operand.vmem [shape: f32[128,128], index: 2, kind: input, shape index: {}]
  %s3 = inlined_call_operand.vmem [shape: f32[128,8], index: 3, kind: input, shape index: {}]
  %s4 = inlined_call_operand.vmem [shape: f32[6,128], index: 4, kind: input, shape index: {}]
  %s5 = inlined_call_operand.vmem [shape: f32[1,8], index: 5, kind: input, shape index: {}]
  %s6 = inlined_call_operand.vmem [shape: f32[20,8], index: 6, kind: output, shape index: {}]
  %s7 = sld [smem:[#allocation0]]
  $region113: #{tpu_custom_call.1} parent=0
    _
  %s9 = ssub.s32 1, %s7
  %s10 = scalar_select 0, %s9, %s7
  $region1: #{tpu_custom_call.1} parent=0
    #allocation2 [shape = 'u8[16384]{0}', space=vmem, size = 0x4000, scoped, tag = 'input window, operand 0']
    #allocation3 [shape = 's32[2]{0}', space=sflag, size = 0x8, scoped, tag = 'scoped memory for tpu_custom_call.1']
    #allocation4 [shape = 'u8[12288]{0}', space=vmem, size = 0x3000, scoped, tag = 'input window, operand 1, single buffered']
    #allocation5 [shape = 's32[1]{0}', space=sflag, size = 0x4, scoped, tag = 'scoped memory for tpu_custom_call.1']
    #allocation6 [shape = 'u8[16384]{0}', space=vmem, size = 0x4000, scoped, tag = 'output window, operand 0']
    %11 = vsyncpa [#allocation3], 0
    %s12 = scalar_lea.sflag [#allocation3], 1
    %13 = vsyncpa %s12, 0
    %14 = vsyncpa [#allocation5], 0
    loop: start=0, step=1, limit=4
    $region2: #{tpu_custom_call.1} parent=1 // loop_pre_header
      _
    $region3: #{tpu_custom_call.1} parent=1 // loop_header
      %s16 = sphi 0, %s20
      %p17 = scmp.ge.s32.totalorder %s16, 4
      %s26 = sphi 0, %s28
      %s29 = sphi 0, %s26
      %s30 = sphi 0, %s29
      %s46 = sphi 0, %s30
      %s50 = sphi 0, %s50
      %s52 = sphi 0, %s50
      %s53 = sphi 0, %s52
      %s67 = sphi 0, %s53
      %s71 = sphi 0, %s71
      %s73 = sphi 0, %s71
      %s74 = sphi 0, %s73
      %s88 = sphi 0, %s74
      %s92 = sphi 0, %s92
      %s94 = sphi 0, %s92
      %s95 = sphi 0, %s94
      %s109 = sphi 0, %s95
      %s113 = sphi 0, %s113
      %s115 = sphi 0, %s113
      %s116 = sphi 0, %s115
      %s130 = sphi 0, %s116
      %s134 = sphi 0, %s134
      %s136 = sphi 0, %s134
      %s137 = sphi 0, %s136
      %s151 = sphi 0, %s137
      %s157 = sphi 0, %s159
      %s160 = sphi 0, %s157
      %s161 = sphi 0, %s160
      %s177 = sphi 0, %s161
    $region4: #{tpu_custom_call.1} parent=1 // loop_header_branch
      %19 = sbr.rel (%p17) target = $region8
    $region5: #{tpu_custom_call.1} parent=1 // loop_body
      %s21 = ssub.s32 %s16, 1
      %s22 = ssub.s32 %s16, 2
      %s23 = sadd.s32 %s16, 1
      %s24 = ssub.s32 %s16, %s23
      %p25 = scmp.eq.s32.totalorder %s24, 0
      %s27 = sadd.s32 %s26, 1
      %s28 = scalar_select %p25, %s26, %s27
      %p31 = pneg %p25
      %p32 = scmp.eq.s32.totalorder %s16, 1
      %p33 = por %p31, %p32
      %p34 = scmp.ne.s32.totalorder %s26, %s29
      %p35 = scmp.eq.s32.totalorder %s16, 0
      %p36 = por %p34, %p35
      %p37 = scmp.ne.s32.totalorder %s26, %s29
      %p38 = scmp.eq.s32.totalorder %s21, 1
      %p39 = por %p37, %p38
      %p40 = scmp.ne.s32.totalorder %s29, %s30
      %p41 = scmp.eq.s32.totalorder %s21, 0
      %p42 = por %p40, %p41
      %p43 = scmp.ne.s32.totalorder %s29, %s30
      %p44 = scmp.eq.s32.totalorder %s22, 1
      %p45 = por %p43, %p44
      %p47 = scmp.ne.s32.totalorder %s30, %s46
      %p48 = scmp.eq.s32.totalorder %s22, 0
      %p49 = por %p47, %p48
      %s51 = sadd.s32 %s50, 1
      %p54 = scmp.eq.s32.totalorder %s16, 1
      %p55 = scmp.ne.s32.totalorder %s50, %s52
      %p56 = scmp.eq.s32.totalorder %s16, 0
      %p57 = por %p55, %p56
      %p58 = scmp.ne.s32.totalorder %s50, %s52
      %p59 = scmp.eq.s32.totalorder %s21, 1
      %p60 = por %p58, %p59
      %p61 = scmp.ne.s32.totalorder %s52, %s53
      %p62 = scmp.eq.s32.totalorder %s21, 0
      %p63 = por %p61, %p62
      %p64 = scmp.ne.s32.totalorder %s52, %s53
      %p65 = scmp.eq.s32.totalorder %s22, 1
      %p66 = por %p64, %p65
      %p68 = scmp.ne.s32.totalorder %s53, %s67
      %p69 = scmp.eq.s32.totalorder %s22, 0
      %p70 = por %p68, %p69
      %s72 = sadd.s32 %s71, 1
      %p75 = scmp.eq.s32.totalorder %s16, 1
      %p76 = scmp.ne.s32.totalorder %s71, %s73
      %p77 = scmp.eq.s32.totalorder %s16, 0
      %p78 = por %p76, %p77
      %p79 = scmp.ne.s32.totalorder %s71, %s73
      %p80 = scmp.eq.s32.totalorder %s21, 1
      %p81 = por %p79, %p80
      %p82 = scmp.ne.s32.totalorder %s73, %s74
      %p83 = scmp.eq.s32.totalorder %s21, 0
      %p84 = por %p82, %p83
      %p85 = scmp.ne.s32.totalorder %s73, %s74
      %p86 = scmp.eq.s32.totalorder %s22, 1
      %p87 = por %p85, %p86
      %p89 = scmp.ne.s32.totalorder %s74, %s88
      %p90 = scmp.eq.s32.totalorder %s22, 0
      %p91 = por %p89, %p90
      %s93 = sadd.s32 %s92, 1
      %p96 = scmp.eq.s32.totalorder %s16, 1
      %p97 = scmp.ne.s32.totalorder %s92, %s94
      %p98 = scmp.eq.s32.totalorder %s16, 0
      %p99 = por %p97, %p98
      %p100 = scmp.ne.s32.totalorder %s92, %s94
      %p101 = scmp.eq.s32.totalorder %s21, 1
      %p102 = por %p100, %p101
      %p103 = scmp.ne.s32.totalorder %s94, %s95
      %p104 = scmp.eq.s32.totalorder %s21, 0
      %p105 = por %p103, %p104
      %p106 = scmp.ne.s32.totalorder %s94, %s95
      %p107 = scmp.eq.s32.totalorder %s22, 1
      %p108 = por %p106, %p107
      %p110 = scmp.ne.s32.totalorder %s95, %s109
      %p111 = scmp.eq.s32.totalorder %s22, 0
      %p112 = por %p110, %p111
      %s114 = sadd.s32 %s113, 1
      %p117 = scmp.eq.s32.totalorder %s16, 1
      %p118 = scmp.ne.s32.totalorder %s113, %s115
      %p119 = scmp.eq.s32.totalorder %s16, 0
      %p120 = por %p118, %p119
      %p121 = scmp.ne.s32.totalorder %s113, %s115
      %p122 = scmp.eq.s32.totalorder %s21, 1
      %p123 = por %p121, %p122
      %p124 = scmp.ne.s32.totalorder %s115, %s116
      %p125 = scmp.eq.s32.totalorder %s21, 0
      %p126 = por %p124, %p125
      %p127 = scmp.ne.s32.totalorder %s115, %s116
      %p128 = scmp.eq.s32.totalorder %s22, 1
      %p129 = por %p127, %p128
      %p131 = scmp.ne.s32.totalorder %s116, %s130
      %p132 = scmp.eq.s32.totalorder %s22, 0
      %p133 = por %p131, %p132
      %s135 = sadd.s32 %s134, 1
      %p138 = scmp.eq.s32.totalorder %s16, 1
      %p139 = scmp.ne.s32.totalorder %s134, %s136
      %p140 = scmp.eq.s32.totalorder %s16, 0
      %p141 = por %p139, %p140
      %p142 = scmp.ne.s32.totalorder %s134, %s136
      %p143 = scmp.eq.s32.totalorder %s21, 1
      %p144 = por %p142, %p143
      %p145 = scmp.ne.s32.totalorder %s136, %s137
      %p146 = scmp.eq.s32.totalorder %s21, 0
      %p147 = por %p145, %p146
      %p148 = scmp.ne.s32.totalorder %s136, %s137
      %p149 = scmp.eq.s32.totalorder %s22, 1
      %p150 = por %p148, %p149
      %p152 = scmp.ne.s32.totalorder %s137, %s151
      %p153 = scmp.eq.s32.totalorder %s22, 0
      %p154 = por %p152, %p153
      %s155 = ssub.s32 %s16, %s23
      %p156 = scmp.eq.s32.totalorder %s155, 0
      %s158 = sadd.s32 %s157, 1
      %s159 = scalar_select %p156, %s157, %s158
      %p162 = pneg %p156
      %p163 = scmp.eq.s32.totalorder %s16, 1
      %p164 = por %p162, %p163
      %p165 = scmp.ne.s32.totalorder %s157, %s160
      %p166 = scmp.eq.s32.totalorder %s16, 0
      %p167 = por %p165, %p166
      %p168 = scmp.ne.s32.totalorder %s157, %s160
      %p169 = scmp.eq.s32.totalorder %s21, 1
      %p170 = por %p168, %p169
      %p171 = scmp.ne.s32.totalorder %s160, %s161
      %p172 = scmp.eq.s32.totalorder %s21, 0
      %p173 = por %p171, %p172
      %p174 = scmp.ne.s32.totalorder %s160, %s161
      %p175 = scmp.eq.s32.totalorder %s22, 1
      %p176 = por %p174, %p175
      %p178 = scmp.ne.s32.totalorder %s161, %s177
      %p179 = scmp.eq.s32.totalorder %s22, 0
      %p180 = por %p178, %p179
      %p181 = scmp.le.s32.totalorder 1, %s16
      %p182 = scmp.lt.s32.totalorder %s16, 3
      %p183 = pnand %p181, %p182
      %p184 = pneg %p183
      // Predicated region
      $region9: #{tpu_custom_call.1} parent=5 // pred_check
        _
      $region10: #{tpu_custom_call.1} parent=5 // pred_check_branch
        %186 = sbr.rel (%p183) target = $region12
      $region11: #{tpu_custom_call.1} parent=5 // pred_region
        %s187 = ssub.s32 %s16, 1
        // Predicated region
        $region13: #{tpu_custom_call.1} parent=11 // pred_check
          %p188 = pneg %p63
        $region14: #{tpu_custom_call.1} parent=11 // pred_check_branch
          %190 = sbr.rel (%p188) target = $region16
        $region15: #{tpu_custom_call.1} parent=11 // pred_region
          %s192 = ssub.s32 384, 384
          %193 = vsyncadd [#allocation5], %s192
          %s194 = sshll.u32 [#allocation4], 4
          %s195 = int_to_ptr.vmem [resolvable:$true] %s194
          %200 = dma.hbm_to_vmem [thread:$0]  %s1, 384, %s195, [#allocation5], 128, 128, 8
        $region16: #{tpu_custom_call.1} parent=11 // pred_fallthru
          _
        // Predicated region
        $region17: #{tpu_custom_call.1} parent=11 // pred_check
          %p201 = pneg %p84
        $region18: #{tpu_custom_call.1} parent=11 // pred_check_branch
          %203 = sbr.rel (%p201) target = $region20
        $region19: #{tpu_custom_call.1} parent=11 // pred_region
          _
        $region20: #{tpu_custom_call.1} parent=11 // pred_fallthru
          _
        // Predicated region
        $region21: #{tpu_custom_call.1} parent=11 // pred_check
          %p204 = pneg %p105
        $region22: #{tpu_custom_call.1} parent=11 // pred_check_branch
          %206 = sbr.rel (%p204) target = $region24
        $region23: #{tpu_custom_call.1} parent=11 // pred_region
          _
        $region24: #{tpu_custom_call.1} parent=11 // pred_fallthru
          _
        // Predicated region
        $region25: #{tpu_custom_call.1} parent=11 // pred_check
          %p207 = pneg %p126
        $region26: #{tpu_custom_call.1} parent=11 // pred_check_branch
          %209 = sbr.rel (%p207) target = $region28
        $region27: #{tpu_custom_call.1} parent=11 // pred_region
          _
        $region28: #{tpu_custom_call.1} parent=11 // pred_fallthru
          _
        // Predicated region
        $region29: #{tpu_custom_call.1} parent=11 // pred_check
          %p210 = pneg %p147
        $region30: #{tpu_custom_call.1} parent=11 // pred_check_branch
          %212 = sbr.rel (%p210) target = $region32
        $region31: #{tpu_custom_call.1} parent=11 // pred_region
          _
        $region32: #{tpu_custom_call.1} parent=11 // pred_fallthru
          _
      $region12: #{tpu_custom_call.1} parent=5 // pred_fallthru
        _
      %p213 = scmp.lt.s32.totalorder %s16, 2
      // Predicated region
      $region33: #{tpu_custom_call.1} parent=5 // pred_check
        %p214 = pneg %p213
      $region34: #{tpu_custom_call.1} parent=5 // pred_check_branch
        %216 = sbr.rel (%p214) target = $region36
      $region35: #{tpu_custom_call.1} parent=5 // pred_region
        // Predicated region
        $region37: #{tpu_custom_call.1} parent=35 // pred_check
          %p217 = pneg %p36
        $region38: #{tpu_custom_call.1} parent=35 // pred_check_branch
          %219 = sbr.rel (%p217) target = $region40
        $region39: #{tpu_custom_call.1} parent=35 // pred_region
          %s220 = sand.u32 %s26, 1
          %s221 = scalar_lea.sflag [#allocation3], %s220
          %s222 = sand.u32 %s26, 1
          %s223 = smul.addr %s222, 16
          %s224 = scalar_lea.vmem [#allocation2], %s223
          %s225 = smul.u32 2, %s16
          %s226 = ssub.s32 3, %s225
          %p227 = scmp.lt.s32.totalorder %s226, 2
          %s228 = scalar_select %p227, %s226, 2
          %s229 = smul.u32 128, %s228
          %s231 = ssub.s32 256, %s229
          %232 = vsyncadd %s221, %s231
          %p233 = scmp.ne.s32.totalorder 0, %s229
          %s234 = smul.addr %s225, 128
          %s235 = scalar_lea.hbm %s0, %s234
          %s236 = smul.u32 8, %s228
          %s237 = sshll.u32 %s224, 4
          %s238 = int_to_ptr.vmem [resolvable:$true] %s237
          %s239 = sshll.u32 %s236, 4
          %243 = dma.hbm_to_vmem [thread:$0]  (%p233), %s235, %s239, %s238, %s221, 128, 128, 8
        $region40: #{tpu_custom_call.1} parent=35 // pred_fallthru
          _
      $region36: #{tpu_custom_call.1} parent=5 // pred_fallthru
        _
      %p244 = scmp.le.s32.totalorder 1, %s16
      %p245 = scmp.lt.s32.totalorder %s16, 3
      %p246 = pnand %p244, %p245
      %p247 = pneg %p246
      // Predicated region
      $region41: #{tpu_custom_call.1} parent=5 // pred_check
        _
      $region42: #{tpu_custom_call.1} parent=5 // pred_check_branch
        %249 = sbr.rel (%p246) target = $region44
      $region43: #{tpu_custom_call.1} parent=5 // pred_region
        %s250 = ssub.s32 %s16, 1
        %s251 = sand.u32 %s29, 1
        %s252 = scalar_lea.sflag [#allocation3], %s251
        %s253 = sand.u32 %s29, 1
        %s254 = smul.addr %s253, 16
        %s255 = scalar_lea.vmem [#allocation2], %s254
        // Predicated region
        $region45: #{tpu_custom_call.1} parent=43 // pred_check
          %p256 = pneg %p42
        $region46: #{tpu_custom_call.1} parent=43 // pred_check_branch
          %258 = sbr.rel (%p256) target = $region48
        $region47: #{tpu_custom_call.1} parent=43 // pred_region
          %259 = dma.done %s252, 256
        $region48: #{tpu_custom_call.1} parent=43 // pred_fallthru
          _
        // Predicated region
        $region49: #{tpu_custom_call.1} parent=43 // pred_check
          %p260 = pneg %p63
        $region50: #{tpu_custom_call.1} parent=43 // pred_check_branch
          %262 = sbr.rel (%p260) target = $region52
        $region51: #{tpu_custom_call.1} parent=43 // pred_region
          %263 = dma.done [#allocation5], 384
        $region52: #{tpu_custom_call.1} parent=43 // pred_fallthru
          _
        %s264 = sand.u32 %s29, 1
        %s265 = scalar_lea.sflag [#allocation3], %s264
        %s266 = sand.u32 %s29, 1
        %s267 = smul.addr %s266, 16
        %s268 = scalar_lea.vmem [#allocation2], %s267
        %p269 = pneg %p42
        %p270 = pneg %p39
        %p271 = pneg %p63
        %p272 = pneg %p60
        %p273 = pneg %p84
        %p274 = pneg %p81
        %p275 = pneg %p105
        %p276 = pneg %p102
        %p277 = pneg %p126
        %p278 = pneg %p123
        %p279 = pneg %p147
        %p280 = pneg %p144
        %p281 = pneg %p173
        %p282 = pneg %p170
        %s283 = sand.u32 %s160, 1
        %s284 = sand.u32 %s160, 1
        %s285 = smul.addr %s284, 16
        %s286 = scalar_lea.vmem [#allocation6], %s285
        %s287 = smul.u32 2, %s21
        %s288 = ssub.s32 3, %s287
        %p289 = scmp.lt.s32.totalorder %s288, 2
        %s290 = scalar_select %p289, %s288, 2
        %s291 = smul.u32 128, %s290
        %s292 = smul.u32 2, %s21
        %s293 = ssub.s32 3, %s292
        %p294 = scmp.lt.s32.totalorder %s293, 2
        %s295 = scalar_select %p294, %s293, 2
        %s296 = smul.u32 128, %s295
        %v297 = vlaneseq
        %v298 = vand.u32 %v297, 127
        %vm299 = vcmp.lt.s32.totalorder %v298, 32
        %v300 = vld [vmem:[%s255] sm:$0xff]
        %v301 = vld [vmem:[%s255 + $0x8] sm:$0xff]
        %v302 = vld [vmem:[#allocation4] sm:$0xff]
        %v303 = vld [vmem:[#allocation4 + $0x8] sm:$0xff]
        %v304 = vld [vmem:[#allocation4 + $0x10] sm:$0xff]
        %v305 = vld [vmem:[%s4] sm:$0x1]
        %v306 = vld [vmem:[%s4 + $0x1] sm:$0x1]
        %v307 = vld [vmem:[%s4 + $0x2] sm:$0x1]
        %v308 = vlaneseq
        %v309 = vshrl.u32 %v308, 7
        %v310 = vsub.s32 0, %v309
        %v311 = vrot.slane %v305, %v310
        %vm312 = vcmask 195584
        %v314 = vsel %vm312, %v300, 0
        %v317 = vsel %vm312, %v301, 0
        %319 = vmatprep.subr.mxu0 0.0
        %320 = vmatpush1.msra.mxu0 0.0
        %321 = vmatprep.subr.mxu0 0.0
        %322 = vmatpush1.msra.mxu0 0.0
        %323 = vmatprep.subr.mxu0 0.0
        %324 = vmatpush1.msra.mxu0 0.0
        %325 = vmatprep.subr.mxu0 0.0
        %326 = vmatpush1.msra.mxu0 0.0
        %327 = vmatprep.subr.mxu0 0.0
        %328 = vmatpush1.msra.mxu0 0.0
        %329 = vmatprep.subr.mxu0 0.0
        %330 = vmatpush1.msra.mxu0 0.0
        %331 = vmatprep.subr.mxu0 0.0
        %332 = vmatpush1.msra.mxu0 0.0
        %333 = vmatprep.subr.mxu0 0.0
        %334 = vmatpush1.msra.mxu0 0.0
        %335 = vmatprep.subr.mxu0 0.0
        %336 = vmatpush1.msra.mxu0 0.0
        %337 = vmatprep.subr.mxu0 0.0
        %338 = vmatpush1.msra.mxu0 0.0
        %339 = vmatprep.subr.mxu0 0.0
        %340 = vmatpush1.msra.mxu0 0.0
        %341 = vmatprep.subr.mxu0 0.0
        %342 = vmatpush1.msra.mxu0 0.0
        %343 = vmatprep.subr.mxu0 0.0
        %344 = vmatpush1.msra.mxu0 0.0
        %345 = vmatprep.subr.mxu0 0.0
        %346 = vmatpush1.msra.mxu0 %v304
        %347 = vmatprep.subr.mxu0 0.0
        %348 = vmatpush1.msra.mxu0 %v303
        %349 = vmatprep.subr.mxu0 0.0
        %350 = vmatpush1.msra.mxu0 %v302
        %351 = vmatprep.subr.mxu0 0.0
        %352 = vmatpush2.msra.mxu0 0.0
        %353 = vmatprep.subr.mxu0 0.0
        %354 = vmatpush2.msra.mxu0 0.0
        %355 = vmatprep.subr.mxu0 0.0
        %356 = vmatpush2.msra.mxu0 0.0
        %357 = vmatprep.subr.mxu0 0.0
        %358 = vmatpush2.msra.mxu0 0.0
        %359 = vmatprep.subr.mxu0 0.0
        %360 = vmatpush2.msra.mxu0 0.0
        %361 = vmatprep.subr.mxu0 0.0
        %362 = vmatpush2.msra.mxu0 0.0
        %363 = vmatprep.subr.mxu0 0.0
        %364 = vmatpush2.msra.mxu0 0.0
        %365 = vmatprep.subr.mxu0 0.0
        %366 = vmatpush2.msra.mxu0 0.0
        %367 = vmatprep.subr.mxu0 0.0
        %368 = vmatpush2.msra.mxu0 0.0
        %369 = vmatprep.subr.mxu0 0.0
        %370 = vmatpush2.msra.mxu0 0.0
        %371 = vmatprep.subr.mxu0 0.0
        %372 = vmatpush2.msra.mxu0 0.0
        %373 = vmatprep.subr.mxu0 0.0
        %374 = vmatpush2.msra.mxu0 0.0
        %375 = vmatprep.subr.mxu0 0.0
        %376 = vmatpush2.msra.mxu0 0.0
        %377 = vmatprep.subr.mxu0 0.0
        %378 = vmatpush2.msra.mxu0 0.0
        %379 = vmatprep.subr.mxu0 0.0
        %380 = vmatpush2.msra.mxu0 0.0
        %381 = vmatprep.subr.mxu0 0.0
        %382 = vmatpush2.msra.mxu0 0.0
        %383 = vmatprep.mubr.f32.mxu0 0.0
        %384 = vmatmul.mubr.f32.gmra.mxu0 %v314
        %v385 = vpop.f32.mrf.mxu0
        %v386 = vadd.f32 %v311, %v385
        %v387 = vpop.f32.mrf.mxu0
        %388 = vmatprep.mubr.f32.mxu0 0.0
        %389 = vmatmul.mubr.f32.gmra.mxu0 %v317
        %v390 = vpop.f32.mrf.mxu0
        %v391 = vadd.f32 %v311, %v390
        %v392 = vpop.f32.mrf.mxu0
        %393 = vdwg.mxu0
        %394 = vadd.xlane.f32.xlu0 %v386
        %v395 = vpop.xlane.xlu0 %394
        %396 = vadd.xlane.f32.xlu0 %v391
        %v397 = vpop.xlane.xlu0 %396
        %v398 = vmul.f32 %v395, 0.03125
        %v399 = vmul.f32 %v397, 0.03125
        %v400 = vsub.f32 %v386, %v398
        %v401 = vsub.f32 %v391, %v399
        %v402 = vsel %vm299, 1, 0
        %vm403 = vcmp.eq.s32.totalorder %v402, 1
        %v404 = vsel %vm403, %v400, 0.0
        %v405 = vsel %vm403, %v401, 0.0
        %v406 = vmul.f32 %v404, %v404
        %v407 = vmul.f32 %v405, %v405
        %408 = vadd.xlane.f32.xlu0 %v406
        %v409 = vpop.xlane.xlu0 %408
        %410 = vadd.xlane.f32.xlu0 %v407
        %v411 = vpop.xlane.xlu0 %410
        %v412 = vmul.f32 %v409, 0.03125
        %v413 = vmul.f32 %v411, 0.03125
        %v414 = vadd.f32 %v412, 1e-05
        %v415 = vadd.f32 %v413, 1e-05
        %v416 = vrsqrt.pop %v414
        %v417 = vrsqrt.pop %v415
        %v418 = vmul.f32 %v404, %v416
        %v419 = vmul.f32 %v405, %v417
        %v420 = vlaneseq
        %v421 = vshrl.u32 %v420, 7
        %v422 = vsub.s32 0, %v421
        %v423 = vrot.slane %v306, %v422
        %v424 = vmul.f32 %v418, %v423
        %v425 = vmul.f32 %v419, %v423
        %v426 = vlaneseq
        %v427 = vshrl.u32 %v426, 7
        %v428 = vsub.s32 0, %v427
        %v429 = vrot.slane %v307, %v428
        %v430 = vadd.f32 %v424, %v429
        %v431 = vadd.f32 %v425, %v429
        %v432 = vmul.f32 %v430, 0.5
        %v433 = vmul.f32 %v431, 0.5
        %v434 = vtanh.pop %v432
        %v435 = vtanh.pop %v433
        %v436 = vmul.f32 %v434, 0.5
        %v437 = vmul.f32 %v435, 0.5
        %v438 = vadd.f32 %v436, 0.5
        %v439 = vadd.f32 %v437, 0.5
        %v440 = vmul.f32 %v430, %v438
        %v441 = vmul.f32 %v431, %v439
        %v442 = vld [vmem:[%s2] sm:$0xff]
        %v443 = vld [vmem:[%s2 + $0x8] sm:$0xff]
        %v444 = vld [vmem:[%s2 + $0x10] sm:$0xff]
        %v445 = vld [vmem:[%s2 + $0x18] sm:$0xff]
        %v446 = vld [vmem:[%s2 + $0x20] sm:$0xff]
        %v447 = vld [vmem:[%s2 + $0x28] sm:$0xff]
        %v448 = vld [vmem:[%s2 + $0x30] sm:$0xff]
        %v449 = vld [vmem:[%s2 + $0x38] sm:$0xff]
        %v450 = vld [vmem:[%s2 + $0x40] sm:$0xff]
        %v451 = vld [vmem:[%s2 + $0x48] sm:$0xff]
        %v452 = vld [vmem:[%s2 + $0x50] sm:$0xff]
        %v453 = vld [vmem:[%s2 + $0x58] sm:$0xff]
        %v454 = vld [vmem:[%s2 + $0x60] sm:$0xff]
        %v455 = vld [vmem:[%s2 + $0x68] sm:$0xff]
        %v456 = vld [vmem:[%s2 + $0x70] sm:$0xff]
        %v457 = vld [vmem:[%s2 + $0x78] sm:$0xff]
        %v458 = vld [vmem:[%s4 + $0x3] sm:$0x1]
        %v459 = vld [vmem:[%s4 + $0x4] sm:$0x1]
        %v460 = vld [vmem:[%s4 + $0x5] sm:$0x1]
        %v461 = vlaneseq
        %v462 = vshrl.u32 %v461, 7
        %v463 = vsub.s32 0, %v462
        %v464 = vrot.slane %v458, %v463
        %465 = vmatprep.subr.mxu0 0.0
        %466 = vmatpush1.msra.mxu0 %v457
        %467 = vmatprep.subr.mxu0 0.0
        %468 = vmatpush1.msra.mxu0 %v456
        %469 = vmatprep.subr.mxu0 0.0
        %470 = vmatpush1.msra.mxu0 %v455
        %471 = vmatprep.subr.mxu0 0.0
        %472 = vmatpush1.msra.mxu0 %v454
        %473 = vmatprep.subr.mxu0 0.0
        %474 = vmatpush1.msra.mxu0 %v453
        %475 = vmatprep.subr.mxu0 0.0
        %476 = vmatpush1.msra.mxu0 %v452
        %477 = vmatprep.subr.mxu0 0.0
        %478 = vmatpush1.msra.mxu0 %v451
        %479 = vmatprep.subr.mxu0 0.0
        %480 = vmatpush1.msra.mxu0 %v450
        %481 = vmatprep.subr.mxu0 0.0
        %482 = vmatpush1.msra.mxu0 %v449
        %483 = vmatprep.subr.mxu0 0.0
        %484 = vmatpush1.msra.mxu0 %v448
        %485 = vmatprep.subr.mxu0 0.0
        %486 = vmatpush1.msra.mxu0 %v447
        %487 = vmatprep.subr.mxu0 0.0
        %488 = vmatpush1.msra.mxu0 %v446
        %489 = vmatprep.subr.mxu0 0.0
        %490 = vmatpush1.msra.mxu0 %v445
        %491 = vmatprep.subr.mxu0 0.0
        %492 = vmatpush1.msra.mxu0 %v444
        %493 = vmatprep.subr.mxu0 0.0
        %494 = vmatpush1.msra.mxu0 %v443
        %495 = vmatprep.subr.mxu0 0.0
        %496 = vmatpush1.msra.mxu0 %v442
        %497 = vmatprep.subr.mxu0 0.0
        %498 = vmatpush2.msra.mxu0 0.0
        %499 = vmatprep.subr.mxu0 0.0
        %500 = vmatpush2.msra.mxu0 0.0
        %501 = vmatprep.subr.mxu0 0.0
        %502 = vmatpush2.msra.mxu0 0.0
        %503 = vmatprep.subr.mxu0 0.0
        %504 = vmatpush2.msra.mxu0 0.0
        %505 = vmatprep.subr.mxu0 0.0
        %506 = vmatpush2.msra.mxu0 0.0
        %507 = vmatprep.subr.mxu0 0.0
        %508 = vmatpush2.msra.mxu0 0.0
        %509 = vmatprep.subr.mxu0 0.0
        %510 = vmatpush2.msra.mxu0 0.0
        %511 = vmatprep.subr.mxu0 0.0
        %512 = vmatpush2.msra.mxu0 0.0
        %513 = vmatprep.subr.mxu0 0.0
        %514 = vmatpush2.msra.mxu0 0.0
        %515 = vmatprep.subr.mxu0 0.0
        %516 = vmatpush2.msra.mxu0 0.0
        %517 = vmatprep.subr.mxu0 0.0
        %518 = vmatpush2.msra.mxu0 0.0
        %519 = vmatprep.subr.mxu0 0.0
        %520 = vmatpush2.msra.mxu0 0.0
        %521 = vmatprep.subr.mxu0 0.0
        %522 = vmatpush2.msra.mxu0 0.0
        %523 = vmatprep.subr.mxu0 0.0
        %524 = vmatpush2.msra.mxu0 0.0
        %525 = vmatprep.subr.mxu0 0.0
        %526 = vmatpush2.msra.mxu0 0.0
        %527 = vmatprep.subr.mxu0 0.0
        %528 = vmatpush2.msra.mxu0 0.0
        %529 = vmatprep.mubr.f32.mxu0 0.0
        %530 = vmatmul.mubr.f32.gmra.mxu0 %v440
        %v531 = vpop.f32.mrf.mxu0
        %v532 = vadd.f32 %v464, %v531
        %v533 = vpop.f32.mrf.mxu0
        %534 = vmatprep.mubr.f32.mxu0 0.0
        %535 = vmatmul.mubr.f32.gmra.mxu0 %v441
        %v536 = vpop.f32.mrf.mxu0
        %v537 = vadd.f32 %v464, %v536
        %v538 = vpop.f32.mrf.mxu0
        %539 = vdwg.mxu0
        %540 = vadd.xlane.f32.xlu0 %v532
        %v541 = vpop.xlane.xlu0 %540
        %542 = vadd.xlane.f32.xlu0 %v537
        %v543 = vpop.xlane.xlu0 %542
        %v544 = vmul.f32 %v541, 0.03125
        %v545 = vmul.f32 %v543, 0.03125
        %v546 = vsub.f32 %v532, %v544
        %v547 = vsub.f32 %v537, %v545
        %v548 = vsel %vm403, %v546, 0.0
        %v549 = vsel %vm403, %v547, 0.0
        %v550 = vmul.f32 %v548, %v548
        %v551 = vmul.f32 %v549, %v549
        %552 = vadd.xlane.f32.xlu0 %v550
        %v553 = vpop.xlane.xlu0 %552
        %554 = vadd.xlane.f32.xlu0 %v551
        %v555 = vpop.xlane.xlu0 %554
        %v556 = vmul.f32 %v553, 0.03125
        %v557 = vmul.f32 %v555, 0.03125
        %v558 = vadd.f32 %v556, 1e-05
        %v559 = vadd.f32 %v557, 1e-05
        %v560 = vrsqrt.pop %v558
        %v561 = vrsqrt.pop %v559
        %v562 = vmul.f32 %v548, %v560
        %v563 = vmul.f32 %v549, %v561
        %v564 = vlaneseq
        %v565 = vshrl.u32 %v564, 7
        %v566 = vsub.s32 0, %v565
        %v567 = vrot.slane %v459, %v566
        %v568 = vmul.f32 %v562, %v567
        %v569 = vmul.f32 %v563, %v567
        %v570 = vlaneseq
        %v571 = vshrl.u32 %v570, 7
        %v572 = vsub.s32 0, %v571
        %v573 = vrot.slane %v460, %v572
        %v574 = vadd.f32 %v568, %v573
        %v575 = vadd.f32 %v569, %v573
        %v576 = vmul.f32 %v574, 0.5
        %v577 = vmul.f32 %v575, 0.5
        %v578 = vtanh.pop %v576
        %v579 = vtanh.pop %v577
        %v580 = vmul.f32 %v578, 0.5
        %v581 = vmul.f32 %v579, 0.5
        %v582 = vadd.f32 %v580, 0.5
        %v583 = vadd.f32 %v581, 0.5
        %v584 = vmul.f32 %v574, %v582
        %v585 = vmul.f32 %v575, %v583
        %v586 = vld [vmem:[%s3] sm:$0xff]
        %v587 = vld [vmem:[%s3 + $0x8] sm:$0xff]
        %v588 = vld [vmem:[%s3 + $0x10] sm:$0xff]
        %v589 = vld [vmem:[%s3 + $0x18] sm:$0xff]
        %v590 = vld [vmem:[%s3 + $0x20] sm:$0xff]
        %v591 = vld [vmem:[%s3 + $0x28] sm:$0xff]
        %v592 = vld [vmem:[%s3 + $0x30] sm:$0xff]
        %v593 = vld [vmem:[%s3 + $0x38] sm:$0xff]
        %v594 = vld [vmem:[%s3 + $0x40] sm:$0xff]
        %v595 = vld [vmem:[%s3 + $0x48] sm:$0xff]
        %v596 = vld [vmem:[%s3 + $0x50] sm:$0xff]
        %v597 = vld [vmem:[%s3 + $0x58] sm:$0xff]
        %v598 = vld [vmem:[%s3 + $0x60] sm:$0xff]
        %v599 = vld [vmem:[%s3 + $0x68] sm:$0xff]
        %v600 = vld [vmem:[%s3 + $0x70] sm:$0xff]
        %v601 = vld [vmem:[%s3 + $0x78] sm:$0xff]
        %v602 = vld [vmem:[%s5] sm:$0x1]
        %v604 = vlaneseq
        %v605 = vshrl.u32 %v604, 7
        %v606 = vsub.s32 0, %v605
        %v607 = vrot.slane %v602, %v606
        %609 = vmatprep.subr.mxu0 0.0
        %610 = vmatpush1.msra.mxu0 %v601
        %611 = vmatprep.subr.mxu0 0.0
        %612 = vmatpush1.msra.mxu0 %v600
        %613 = vmatprep.subr.mxu0 0.0
        %614 = vmatpush1.msra.mxu0 %v599
        %615 = vmatprep.subr.mxu0 0.0
        %616 = vmatpush1.msra.mxu0 %v598
        %617 = vmatprep.subr.mxu0 0.0
        %618 = vmatpush1.msra.mxu0 %v597
        %619 = vmatprep.subr.mxu0 0.0
        %620 = vmatpush1.msra.mxu0 %v596
        %621 = vmatprep.subr.mxu0 0.0
        %622 = vmatpush1.msra.mxu0 %v595
        %623 = vmatprep.subr.mxu0 0.0
        %624 = vmatpush1.msra.mxu0 %v594
        %625 = vmatprep.subr.mxu0 0.0
        %626 = vmatpush1.msra.mxu0 %v593
        %627 = vmatprep.subr.mxu0 0.0
        %628 = vmatpush1.msra.mxu0 %v592
        %629 = vmatprep.subr.mxu0 0.0
        %630 = vmatpush1.msra.mxu0 %v591
        %631 = vmatprep.subr.mxu0 0.0
        %632 = vmatpush1.msra.mxu0 %v590
        %633 = vmatprep.subr.mxu0 0.0
        %634 = vmatpush1.msra.mxu0 %v589
        %635 = vmatprep.subr.mxu0 0.0
        %636 = vmatpush1.msra.mxu0 %v588
        %637 = vmatprep.subr.mxu0 0.0
        %638 = vmatpush1.msra.mxu0 %v587
        %639 = vmatprep.subr.mxu0 0.0
        %640 = vmatpush1.msra.mxu0 %v586
        %641 = vmatprep.subr.mxu0 0.0
        %642 = vmatpush2.msra.mxu0 0.0
        %643 = vmatprep.subr.mxu0 0.0
        %644 = vmatpush2.msra.mxu0 0.0
        %645 = vmatprep.subr.mxu0 0.0
        %646 = vmatpush2.msra.mxu0 0.0
        %647 = vmatprep.subr.mxu0 0.0
        %648 = vmatpush2.msra.mxu0 0.0
        %649 = vmatprep.subr.mxu0 0.0
        %650 = vmatpush2.msra.mxu0 0.0
        %651 = vmatprep.subr.mxu0 0.0
        %652 = vmatpush2.msra.mxu0 0.0
        %653 = vmatprep.subr.mxu0 0.0
        %654 = vmatpush2.msra.mxu0 0.0
        %655 = vmatprep.subr.mxu0 0.0
        %656 = vmatpush2.msra.mxu0 0.0
        %657 = vmatprep.subr.mxu0 0.0
        %658 = vmatpush2.msra.mxu0 0.0
        %659 = vmatprep.subr.mxu0 0.0
        %660 = vmatpush2.msra.mxu0 0.0
        %661 = vmatprep.subr.mxu0 0.0
        %662 = vmatpush2.msra.mxu0 0.0
        %663 = vmatprep.subr.mxu0 0.0
        %664 = vmatpush2.msra.mxu0 0.0
        %665 = vmatprep.subr.mxu0 0.0
        %666 = vmatpush2.msra.mxu0 0.0
        %667 = vmatprep.subr.mxu0 0.0
        %668 = vmatpush2.msra.mxu0 0.0
        %669 = vmatprep.subr.mxu0 0.0
        %670 = vmatpush2.msra.mxu0 0.0
        %671 = vmatprep.subr.mxu0 0.0
        %672 = vmatpush2.msra.mxu0 0.0
        %673 = vmatprep.mubr.f32.mxu0 0.0
        %674 = vmatmul.mubr.f32.gmra.mxu0 %v584
        %v675 = vpop.f32.mrf.mxu0
        %v676 = vadd.f32 %v607, %v675
        %v677 = vpop.f32.mrf.mxu0
        %678 = vmatprep.mubr.f32.mxu0 0.0
        %679 = vmatmul.mubr.f32.gmra.mxu0 %v585
        %v680 = vpop.f32.mrf.mxu0
        %v681 = vadd.f32 %v607, %v680
        %v682 = vpop.f32.mrf.mxu0
        %683 = vdwg.mxu0
        %vm684 = vcmask 64512
        %685 = vst.msk [vmem:[%s286] sm:$0xff] %vm684, %v676
        %686 = vst.msk [vmem:[%s286 + $0x8] sm:$0xff] %vm684, %v681
        %s687 = sand.u32 %s160, 1
        %s688 = sand.u32 %s160, 1
        %s689 = smul.addr %s688, 16
        %s690 = scalar_lea.vmem [#allocation6], %s689
        // Predicated region
        $region53: #{tpu_custom_call.1} parent=43 // pred_check
          %p691 = pneg %p170
        $region54: #{tpu_custom_call.1} parent=43 // pred_check_branch
          %693 = sbr.rel (%p691) target = $region56
        $region55: #{tpu_custom_call.1} parent=43 // pred_region
          %s694 = smul.u32 2, %s21
          %s695 = ssub.s32 3, %s694
          %p696 = scmp.lt.s32.totalorder %s695, 2
          %s697 = scalar_select %p696, %s695, 2
          %s698 = smul.u32 128, %s697
          %p699 = scmp.ne.s32.totalorder 0, %s698
          %s700 = smul.addr %s694, 8
          %s701 = scalar_lea.vmem %s6, %s700
          // Predicated region
          $region57: #{tpu_custom_call.1} parent=55 // pred_check
            %p702 = pneg %p699
          $region58: #{tpu_custom_call.1} parent=55 // pred_check_branch
            %704 = sbr.rel (%p702) target = $region60
          $region59: #{tpu_custom_call.1} parent=55 // pred_region
            // Predicated region
            $region61: #{tpu_custom_call.1} parent=59 // pred_check
              _
            $region62: #{tpu_custom_call.1} parent=59 // pred_check_branch
              %706 = sbr.rel (0) target = $region64
            $region63: #{tpu_custom_call.1} parent=59 // pred_region
              // Predicated region
              $region83: #{tpu_custom_call.1} parent=63 // pred_check
                _
              $region84: #{tpu_custom_call.1} parent=63 // pred_check_branch
                %758 = sbr.rel (0) target = $region86
              $region85: #{tpu_custom_call.1} parent=63 // pred_region
                %s759 = sshrl.u32 %s697, 1
                // While loop
                $region87: #{tpu_custom_call.1} parent=85 // loop_pre_header
                  _
                $region88: #{tpu_custom_call.1} parent=85 // loop_header
                  %s761 = sphi 0, %s763
                  %p762 = scmp.ge.s32.totalorder %s761, %s759
                  %s766 = sphi 0, %s775
                  %s767 = sphi %s690, %s778
                  %s768 = sphi %s701, %s779
                $region89: #{tpu_custom_call.1} parent=85 // loop_header_branch
                  %765 = sbr.rel (%p762) target = $region93
                $region90: #{tpu_custom_call.1} parent=85 // loop_body
                  %v769 = vld [vmem:[%s767] sm:$0xff]
                  %770 = vst [vmem:[%s768] sm:$0xff] %v769
                  %v771 = vld [vmem:[%s767 + $0x8] sm:$0xff]
                  %772 = vst [vmem:[%s768 + $0x8] sm:$0xff] %v771
                  %s773 = sadd.s32 1, %s766
                  %p774 = scmp.ge.s32.totalorder %s773, %s759
                  %s775 = scalar_select %p774, 0, %s773
                  %s776 = smul.u32 %s775, 16
                  %s777 = smul.u32 %s775, 16
                  %s778 = scalar_lea.vmem %s690, %s776 [#allocation6]
                  %s779 = scalar_lea.vmem %s701, %s777
                $region91: #{tpu_custom_call.1} parent=85 // loop_footer
                  %s763 = sadd.s32 %s761, 1
                $region92: #{tpu_custom_call.1} parent=85 // loop_footer_branch
                  %760 = sbr.rel target = $region88
                $region93: #{tpu_custom_call.1} parent=85 // loop_exit
                  _
                %s780 = sshrl.u32 %s697, 1
                %s781 = sand.u32 %s697, 1
                %s782 = smul.u32 %s780, 2
                %s783 = smul.u32 8, %s782
                %s784 = scalar_lea.vmem %s690, %s783 [#allocation6]
                %s785 = smul.u32 8, %s782
                %s786 = scalar_lea.vmem %s701, %s785
                // While loop
                $region94: #{tpu_custom_call.1} parent=85 // loop_pre_header
                  _
                $region95: #{tpu_custom_call.1} parent=85 // loop_header
                  %s788 = sphi 0, %s790
                  %p789 = scmp.ge.s32.totalorder %s788, %s781
                  %s793 = sphi 0, %s800
                  %s794 = sphi %s784, %s803
                  %s795 = sphi %s786, %s804
                $region96: #{tpu_custom_call.1} parent=85 // loop_header_branch
                  %792 = sbr.rel (%p789) target = $region100
                $region97: #{tpu_custom_call.1} parent=85 // loop_body
                  %v796 = vld [vmem:[%s794] sm:$0xff]
                  %797 = vst [vmem:[%s795] sm:$0xff] %v796
                  %s798 = sadd.s32 1, %s793
                  %p799 = scmp.ge.s32.totalorder %s798, %s781
                  %s800 = scalar_select %p799, 0, %s798
                  %s801 = smul.u32 %s800, 8
                  %s802 = smul.u32 %s800, 8
                  %s803 = scalar_lea.vmem %s784, %s801 [#allocation6]
                  %s804 = scalar_lea.vmem %s786, %s802
                $region98: #{tpu_custom_call.1} parent=85 // loop_footer
                  %s790 = sadd.s32 %s788, 1
                $region99: #{tpu_custom_call.1} parent=85 // loop_footer_branch
                  %787 = sbr.rel target = $region95
                $region100: #{tpu_custom_call.1} parent=85 // loop_exit
                  _
              $region86: #{tpu_custom_call.1} parent=63 // pred_fallthru
                _
              // Predicated region
              $region101: #{tpu_custom_call.1} parent=63 // pred_check
                _
              $region102: #{tpu_custom_call.1} parent=63 // pred_check_branch
                %806 = sbr.rel target = $region104
              $region103: #{tpu_custom_call.1} parent=63 // pred_region
                _
              $region104: #{tpu_custom_call.1} parent=63 // pred_fallthru
                _
            $region64: #{tpu_custom_call.1} parent=59 // pred_fallthru
              _
            // Predicated region
            $region65: #{tpu_custom_call.1} parent=59 // pred_check
              _
            $region66: #{tpu_custom_call.1} parent=59 // pred_check_branch
              %708 = sbr.rel target = $region68
            $region67: #{tpu_custom_call.1} parent=59 // pred_region
              %s710 = ssub.s32 256, 1
              %s711 = sshrl.u32 %s697, 1
              // While loop
              $region69: #{tpu_custom_call.1} parent=67 // loop_pre_header
                _
              $region70: #{tpu_custom_call.1} parent=67 // loop_header
                %s713 = sphi 0, %s715
                %p714 = scmp.ge.s32.totalorder %s713, %s711
                %s718 = sphi 0, %s727
                %s719 = sphi %s690, %s730
                %s720 = sphi %s701, %s731
              $region71: #{tpu_custom_call.1} parent=67 // loop_header_branch
                %717 = sbr.rel (%p714) target = $region75
              $region72: #{tpu_custom_call.1} parent=67 // loop_body
                %v721 = vld [vmem:[%s719] sm:%s710]
                %722 = vst [vmem:[%s720] sm:%s710] %v721
                %v723 = vld [vmem:[%s719 + $0x8] sm:%s710]
                %724 = vst [vmem:[%s720 + $0x8] sm:%s710] %v723
                %s725 = sadd.s32 1, %s718
                %p726 = scmp.ge.s32.totalorder %s725, %s711
                %s727 = scalar_select %p726, 0, %s725
                %s728 = smul.u32 %s727, 16
                %s729 = smul.u32 %s727, 16
                %s730 = scalar_lea.vmem %s690, %s728 [#allocation6]
                %s731 = scalar_lea.vmem %s701, %s729
              $region73: #{tpu_custom_call.1} parent=67 // loop_footer
                %s715 = sadd.s32 %s713, 1
              $region74: #{tpu_custom_call.1} parent=67 // loop_footer_branch
                %712 = sbr.rel target = $region70
              $region75: #{tpu_custom_call.1} parent=67 // loop_exit
                _
              %s732 = sshrl.u32 %s697, 1
              %s733 = sand.u32 %s697, 1
              %s734 = smul.u32 %s732, 2
              %s735 = smul.u32 8, %s734
              %s736 = scalar_lea.vmem %s690, %s735 [#allocation6]
              %s737 = smul.u32 8, %s734
              %s738 = scalar_lea.vmem %s701, %s737
              // While loop
              $region76: #{tpu_custom_call.1} parent=67 // loop_pre_header
                _
              $region77: #{tpu_custom_call.1} parent=67 // loop_header
                %s740 = sphi 0, %s742
                %p741 = scmp.ge.s32.totalorder %s740, %s733
                %s745 = sphi 0, %s752
                %s746 = sphi %s736, %s755
                %s747 = sphi %s738, %s756
              $region78: #{tpu_custom_call.1} parent=67 // loop_header_branch
                %744 = sbr.rel (%p741) target = $region82
              $region79: #{tpu_custom_call.1} parent=67 // loop_body
                %v748 = vld [vmem:[%s746] sm:%s710]
                %749 = vst [vmem:[%s747] sm:%s710] %v748
                %s750 = sadd.s32 1, %s745
                %p751 = scmp.ge.s32.totalorder %s750, %s733
                %s752 = scalar_select %p751, 0, %s750
                %s753 = smul.u32 %s752, 8
                %s754 = smul.u32 %s752, 8
                %s755 = scalar_lea.vmem %s736, %s753 [#allocation6]
                %s756 = scalar_lea.vmem %s738, %s754
              $region80: #{tpu_custom_call.1} parent=67 // loop_footer
                %s742 = sadd.s32 %s740, 1
              $region81: #{tpu_custom_call.1} parent=67 // loop_footer_branch
                %739 = sbr.rel target = $region77
              $region82: #{tpu_custom_call.1} parent=67 // loop_exit
                _
            $region68: #{tpu_custom_call.1} parent=59 // pred_fallthru
              _
          $region60: #{tpu_custom_call.1} parent=55 // pred_fallthru
            _
          %807 = vnop
        $region56: #{tpu_custom_call.1} parent=43 // pred_fallthru
          _
      $region44: #{tpu_custom_call.1} parent=5 // pred_fallthru
        _
      %p808 = scmp.le.s32.totalorder 2, %s16
      // Predicated region
      $region105: #{tpu_custom_call.1} parent=5 // pred_check
        %p809 = pneg %p808
      $region106: #{tpu_custom_call.1} parent=5 // pred_check_branch
        %811 = sbr.rel (%p809) target = $region108
      $region107: #{tpu_custom_call.1} parent=5 // pred_region
        %s812 = ssub.s32 %s16, 2
        // Predicated region
        $region109: #{tpu_custom_call.1} parent=107 // pred_check
          %p813 = pneg %p176
        $region110: #{tpu_custom_call.1} parent=107 // pred_check_branch
          %815 = sbr.rel (%p813) target = $region112
        $region111: #{tpu_custom_call.1} parent=107 // pred_region
          %s816 = sand.u32 %s161, 1
          %s817 = sand.u32 %s161, 1
          %s818 = smul.addr %s817, 16
          %s819 = scalar_lea.vmem [#allocation6], %s818
        $region112: #{tpu_custom_call.1} parent=107 // pred_fallthru
          _
      $region108: #{tpu_custom_call.1} parent=5 // pred_fallthru
        _
    $region6: #{tpu_custom_call.1} parent=1 // loop_footer
      %s20 = sadd.s32 1, %s16
    $region7: #{tpu_custom_call.1} parent=1 // loop_footer_branch
      %15 = sbr.rel target = $region3
    $region8: #{tpu_custom_call.1} parent=1 // loop_exit
      _
    %820 = vsyncpa [#allocation3], 1
    %s821 = scalar_lea.sflag [#allocation3], 1
    %822 = vsyncpa %s821, 1
    %823 = vsyncpa [#allocation5], 1

// kernel: tpu_custom_call.1
$region0: #{tpu_custom_call.1}
  #allocation0 [shape = 'u32[]', space=smem, size = 0x4, offset = 0x4, fixed_abs, tag = 'smem constant byte address 0x4 - core index']
  #allocation1 [shape = 'u32[144,128]{1,0:T(1,128)}', space=vmem, size = 0x12000, scoped, tag = 'internal scratch']
  %s0 = inlined_call_operand.hbm [shape: f32[20,24], index: 0, kind: input, shape index: {}]
  %s1 = inlined_call_operand.hbm [shape: f32[24,128], index: 1, kind: input, shape index: {}]
  %s2 = inlined_call_operand.vmem [shape: f32[128,128], index: 2, kind: input, shape index: {}]
  %s3 = inlined_call_operand.vmem [shape: f32[128,8], index: 3, kind: input, shape index: {}]
  %s4 = inlined_call_operand.vmem [shape: f32[6,128], index: 4, kind: input, shape index: {}]
  %s5 = inlined_call_operand.vmem [shape: f32[1,8], index: 5, kind: input, shape index: {}]
  %s6 = inlined_call_operand.vmem [shape: f32[20,8], index: 6, kind: output, shape index: {}]
  %s7 = sld [smem:[#allocation0]]
  $region113: #{tpu_custom_call.1} parent=0
    _
  %s9 = ssub.s32 1, %s7
  %s10 = scalar_select 0, %s9, %s7
  $region1: #{tpu_custom_call.1} parent=0
    #allocation2 [shape = 'u8[16384]{0}', space=vmem, size = 0x4000, scoped, tag = 'input window, operand 0']
    #allocation3 [shape = 's32[2]{0}', space=sflag, size = 0x8, scoped, tag = 'scoped memory for tpu_custom_call.1']
    #allocation4 [shape = 'u8[12288]{0}', space=vmem, size = 0x3000, scoped, tag = 'input window, operand 1, single buffered']
    #allocation5 [shape = 's32[1]{0}', space=sflag, size = 0x4, scoped, tag = 'scoped memory for tpu_custom_call.1']
    #allocation6 [shape = 'u8[16384]{0}', space=vmem, size = 0x4000, scoped, tag = 'output window, operand 0']
    %11 = vsyncpa [#allocation3], 0
    %s12 = scalar_lea.sflag [#allocation3], 1
    %13 = vsyncpa %s12, 0
    %14 = vsyncpa [#allocation5], 0
    loop: start=0, step=1, limit=4
    $region2: #{tpu_custom_call.1} parent=1 // loop_pre_header
      _
    $region3: #{tpu_custom_call.1} parent=1 // loop_header
      %s16 = sphi 0, %s20
      %p17 = scmp.ge.s32.totalorder %s16, 4
      %s26 = sphi 0, %s28
      %s29 = sphi 0, %s26
      %s30 = sphi 0, %s29
      %s46 = sphi 0, %s30
      %s50 = sphi 0, %s50
      %s52 = sphi 0, %s50
      %s53 = sphi 0, %s52
      %s67 = sphi 0, %s53
      %s71 = sphi 0, %s71
      %s73 = sphi 0, %s71
      %s74 = sphi 0, %s73
      %s88 = sphi 0, %s74
      %s92 = sphi 0, %s92
      %s94 = sphi 0, %s92
      %s95 = sphi 0, %s94
      %s109 = sphi 0, %s95
      %s113 = sphi 0, %s113
      %s115 = sphi 0, %s113
      %s116 = sphi 0, %s115
      %s130 = sphi 0, %s116
      %s134 = sphi 0, %s134
      %s136 = sphi 0, %s134
      %s137 = sphi 0, %s136
      %s151 = sphi 0, %s137
      %s157 = sphi 0, %s159
      %s160 = sphi 0, %s157
      %s161 = sphi 0, %s160
      %s177 = sphi 0, %s161
    $region4: #{tpu_custom_call.1} parent=1 // loop_header_branch
      %19 = sbr.rel (%p17) target = $region8
    $region5: #{tpu_custom_call.1} parent=1 // loop_body
      %s21 = ssub.s32 %s16, 1
      %s22 = ssub.s32 %s16, 2
      %s23 = sadd.s32 %s16, 1
      %s24 = ssub.s32 %s16, %s23
      %p25 = scmp.eq.s32.totalorder %s24, 0
      %s27 = sadd.s32 %s26, 1
      %s28 = scalar_select %p25, %s26, %s27
      %p31 = pneg %p25
      %p32 = scmp.eq.s32.totalorder %s16, 1
      %p33 = por %p31, %p32
      %p34 = scmp.ne.s32.totalorder %s26, %s29
      %p35 = scmp.eq.s32.totalorder %s16, 0
      %p36 = por %p34, %p35
      %p37 = scmp.ne.s32.totalorder %s26, %s29
      %p38 = scmp.eq.s32.totalorder %s21, 1
      %p39 = por %p37, %p38
      %p40 = scmp.ne.s32.totalorder %s29, %s30
      %p41 = scmp.eq.s32.totalorder %s21, 0
      %p42 = por %p40, %p41
      %p43 = scmp.ne.s32.totalorder %s29, %s30
      %p44 = scmp.eq.s32.totalorder %s22, 1
      %p45 = por %p43, %p44
      %p47 = scmp.ne.s32.totalorder %s30, %s46
      %p48 = scmp.eq.s32.totalorder %s22, 0
      %p49 = por %p47, %p48
      %s51 = sadd.s32 %s50, 1
      %p54 = scmp.eq.s32.totalorder %s16, 1
      %p55 = scmp.ne.s32.totalorder %s50, %s52
      %p56 = scmp.eq.s32.totalorder %s16, 0
      %p57 = por %p55, %p56
      %p58 = scmp.ne.s32.totalorder %s50, %s52
      %p59 = scmp.eq.s32.totalorder %s21, 1
      %p60 = por %p58, %p59
      %p61 = scmp.ne.s32.totalorder %s52, %s53
      %p62 = scmp.eq.s32.totalorder %s21, 0
      %p63 = por %p61, %p62
      %p64 = scmp.ne.s32.totalorder %s52, %s53
      %p65 = scmp.eq.s32.totalorder %s22, 1
      %p66 = por %p64, %p65
      %p68 = scmp.ne.s32.totalorder %s53, %s67
      %p69 = scmp.eq.s32.totalorder %s22, 0
      %p70 = por %p68, %p69
      %s72 = sadd.s32 %s71, 1
      %p75 = scmp.eq.s32.totalorder %s16, 1
      %p76 = scmp.ne.s32.totalorder %s71, %s73
      %p77 = scmp.eq.s32.totalorder %s16, 0
      %p78 = por %p76, %p77
      %p79 = scmp.ne.s32.totalorder %s71, %s73
      %p80 = scmp.eq.s32.totalorder %s21, 1
      %p81 = por %p79, %p80
      %p82 = scmp.ne.s32.totalorder %s73, %s74
      %p83 = scmp.eq.s32.totalorder %s21, 0
      %p84 = por %p82, %p83
      %p85 = scmp.ne.s32.totalorder %s73, %s74
      %p86 = scmp.eq.s32.totalorder %s22, 1
      %p87 = por %p85, %p86
      %p89 = scmp.ne.s32.totalorder %s74, %s88
      %p90 = scmp.eq.s32.totalorder %s22, 0
      %p91 = por %p89, %p90
      %s93 = sadd.s32 %s92, 1
      %p96 = scmp.eq.s32.totalorder %s16, 1
      %p97 = scmp.ne.s32.totalorder %s92, %s94
      %p98 = scmp.eq.s32.totalorder %s16, 0
      %p99 = por %p97, %p98
      %p100 = scmp.ne.s32.totalorder %s92, %s94
      %p101 = scmp.eq.s32.totalorder %s21, 1
      %p102 = por %p100, %p101
      %p103 = scmp.ne.s32.totalorder %s94, %s95
      %p104 = scmp.eq.s32.totalorder %s21, 0
      %p105 = por %p103, %p104
      %p106 = scmp.ne.s32.totalorder %s94, %s95
      %p107 = scmp.eq.s32.totalorder %s22, 1
      %p108 = por %p106, %p107
      %p110 = scmp.ne.s32.totalorder %s95, %s109
      %p111 = scmp.eq.s32.totalorder %s22, 0
      %p112 = por %p110, %p111
      %s114 = sadd.s32 %s113, 1
      %p117 = scmp.eq.s32.totalorder %s16, 1
      %p118 = scmp.ne.s32.totalorder %s113, %s115
      %p119 = scmp.eq.s32.totalorder %s16, 0
      %p120 = por %p118, %p119
      %p121 = scmp.ne.s32.totalorder %s113, %s115
      %p122 = scmp.eq.s32.totalorder %s21, 1
      %p123 = por %p121, %p122
      %p124 = scmp.ne.s32.totalorder %s115, %s116
      %p125 = scmp.eq.s32.totalorder %s21, 0
      %p126 = por %p124, %p125
      %p127 = scmp.ne.s32.totalorder %s115, %s116
      %p128 = scmp.eq.s32.totalorder %s22, 1
      %p129 = por %p127, %p128
      %p131 = scmp.ne.s32.totalorder %s116, %s130
      %p132 = scmp.eq.s32.totalorder %s22, 0
      %p133 = por %p131, %p132
      %s135 = sadd.s32 %s134, 1
      %p138 = scmp.eq.s32.totalorder %s16, 1
      %p139 = scmp.ne.s32.totalorder %s134, %s136
      %p140 = scmp.eq.s32.totalorder %s16, 0
      %p141 = por %p139, %p140
      %p142 = scmp.ne.s32.totalorder %s134, %s136
      %p143 = scmp.eq.s32.totalorder %s21, 1
      %p144 = por %p142, %p143
      %p145 = scmp.ne.s32.totalorder %s136, %s137
      %p146 = scmp.eq.s32.totalorder %s21, 0
      %p147 = por %p145, %p146
      %p148 = scmp.ne.s32.totalorder %s136, %s137
      %p149 = scmp.eq.s32.totalorder %s22, 1
      %p150 = por %p148, %p149
      %p152 = scmp.ne.s32.totalorder %s137, %s151
      %p153 = scmp.eq.s32.totalorder %s22, 0
      %p154 = por %p152, %p153
      %s155 = ssub.s32 %s16, %s23
      %p156 = scmp.eq.s32.totalorder %s155, 0
      %s158 = sadd.s32 %s157, 1
      %s159 = scalar_select %p156, %s157, %s158
      %p162 = pneg %p156
      %p163 = scmp.eq.s32.totalorder %s16, 1
      %p164 = por %p162, %p163
      %p165 = scmp.ne.s32.totalorder %s157, %s160
      %p166 = scmp.eq.s32.totalorder %s16, 0
      %p167 = por %p165, %p166
      %p168 = scmp.ne.s32.totalorder %s157, %s160
      %p169 = scmp.eq.s32.totalorder %s21, 1
      %p170 = por %p168, %p169
      %p171 = scmp.ne.s32.totalorder %s160, %s161
      %p172 = scmp.eq.s32.totalorder %s21, 0
      %p173 = por %p171, %p172
      %p174 = scmp.ne.s32.totalorder %s160, %s161
      %p175 = scmp.eq.s32.totalorder %s22, 1
      %p176 = por %p174, %p175
      %p178 = scmp.ne.s32.totalorder %s161, %s177
      %p179 = scmp.eq.s32.totalorder %s22, 0
      %p180 = por %p178, %p179
      %p181 = scmp.le.s32.totalorder 1, %s16
      %p182 = scmp.lt.s32.totalorder %s16, 3
      %p183 = pnand %p181, %p182
      %p184 = pneg %p183
      // Predicated region
      $region9: #{tpu_custom_call.1} parent=5 // pred_check
        _
      $region10: #{tpu_custom_call.1} parent=5 // pred_check_branch
        %186 = sbr.rel (%p183) target = $region12
      $region11: #{tpu_custom_call.1} parent=5 // pred_region
        %s187 = ssub.s32 %s16, 1
        // Predicated region
        $region13: #{tpu_custom_call.1} parent=11 // pred_check
          %p188 = pneg %p63
        $region14: #{tpu_custom_call.1} parent=11 // pred_check_branch
          %190 = sbr.rel (%p188) target = $region16
        $region15: #{tpu_custom_call.1} parent=11 // pred_region
          %s192 = ssub.s32 384, 384
          %193 = vsyncadd [#allocation5], %s192
          %s194 = sshll.u32 [#allocation4], 4
          %s195 = int_to_ptr.vmem [resolvable:$true] %s194
          %200 = dma.hbm_to_vmem [thread:$0]  %s1, 384, %s195, [#allocation5], 128, 128, 8
        $region16: #{tpu_custom_call.1} parent=11 // pred_fallthru
          _
        // Predicated region
        $region17: #{tpu_custom_call.1} parent=11 // pred_check
          %p201 = pneg %p84
        $region18: #{tpu_custom_call.1} parent=11 // pred_check_branch
          %203 = sbr.rel (%p201) target = $region20
        $region19: #{tpu_custom_call.1} parent=11 // pred_region
          _
        $region20: #{tpu_custom_call.1} parent=11 // pred_fallthru
          _
        // Predicated region
        $region21: #{tpu_custom_call.1} parent=11 // pred_check
          %p204 = pneg %p105
        $region22: #{tpu_custom_call.1} parent=11 // pred_check_branch
          %206 = sbr.rel (%p204) target = $region24
        $region23: #{tpu_custom_call.1} parent=11 // pred_region
          _
        $region24: #{tpu_custom_call.1} parent=11 // pred_fallthru
          _
        // Predicated region
        $region25: #{tpu_custom_call.1} parent=11 // pred_check
          %p207 = pneg %p126
        $region26: #{tpu_custom_call.1} parent=11 // pred_check_branch
          %209 = sbr.rel (%p207) target = $region28
        $region27: #{tpu_custom_call.1} parent=11 // pred_region
          _
        $region28: #{tpu_custom_call.1} parent=11 // pred_fallthru
          _
        // Predicated region
        $region29: #{tpu_custom_call.1} parent=11 // pred_check
          %p210 = pneg %p147
        $region30: #{tpu_custom_call.1} parent=11 // pred_check_branch
          %212 = sbr.rel (%p210) target = $region32
        $region31: #{tpu_custom_call.1} parent=11 // pred_region
          _
        $region32: #{tpu_custom_call.1} parent=11 // pred_fallthru
          _
      $region12: #{tpu_custom_call.1} parent=5 // pred_fallthru
        _
      %p213 = scmp.lt.s32.totalorder %s16, 2
      // Predicated region
      $region33: #{tpu_custom_call.1} parent=5 // pred_check
        %p214 = pneg %p213
      $region34: #{tpu_custom_call.1} parent=5 // pred_check_branch
        %216 = sbr.rel (%p214) target = $region36
      $region35: #{tpu_custom_call.1} parent=5 // pred_region
        // Predicated region
        $region37: #{tpu_custom_call.1} parent=35 // pred_check
          %p217 = pneg %p36
        $region38: #{tpu_custom_call.1} parent=35 // pred_check_branch
          %219 = sbr.rel (%p217) target = $region40
        $region39: #{tpu_custom_call.1} parent=35 // pred_region
          %s220 = sand.u32 %s26, 1
          %s221 = scalar_lea.sflag [#allocation3], %s220
          %s222 = sand.u32 %s26, 1
          %s223 = smul.addr %s222, 16
          %s224 = scalar_lea.vmem [#allocation2], %s223
          %s225 = smul.u32 2, %s16
          %s226 = ssub.s32 3, %s225
          %p227 = scmp.lt.s32.totalorder %s226, 2
          %s228 = scalar_select %p227, %s226, 2
          %s229 = smul.u32 128, %s228
          %s231 = ssub.s32 256, %s229
          %232 = vsyncadd %s221, %s231
          %p233 = scmp.ne.s32.totalorder 0, %s229
          %s234 = smul.addr %s225, 128
          %s235 = scalar_lea.hbm %s0, %s234
          %s236 = smul.u32 8, %s228
          %s237 = sshll.u32 %s224, 4
          %s238 = int_to_ptr.vmem [resolvable:$true] %s237
          %s239 = sshll.u32 %s236, 4
          %243 = dma.hbm_to_vmem [thread:$0]  (%p233), %s235, %s239, %s238, %s221, 128, 128, 8
        $region40: #{tpu_custom_call.1} parent=35 // pred_fallthru
          _
      $region36: #{tpu_custom_call.1} parent=5 // pred_fallthru
        _
      %p244 = scmp.le.s32.totalorder 1, %s16
      %p245 = scmp.lt.s32.totalorder %s16, 3
      %p246 = pnand %p244, %p245
      %p247 = pneg %p246
      // Predicated region
      $region41: #{tpu_custom_call.1} parent=5 // pred_check
        _
      $region42: #{tpu_custom_call.1} parent=5 // pred_check_branch
        %249 = sbr.rel (%p246) target = $region44
      $region43: #{tpu_custom_call.1} parent=5 // pred_region
        %s250 = ssub.s32 %s16, 1
        %s251 = sand.u32 %s29, 1
        %s252 = scalar_lea.sflag [#allocation3], %s251
        %s253 = sand.u32 %s29, 1
        %s254 = smul.addr %s253, 16
        %s255 = scalar_lea.vmem [#allocation2], %s254
        // Predicated region
        $region45: #{tpu_custom_call.1} parent=43 // pred_check
          %p256 = pneg %p42
        $region46: #{tpu_custom_call.1} parent=43 // pred_check_branch
          %258 = sbr.rel (%p256) target = $region48
        $region47: #{tpu_custom_call.1} parent=43 // pred_region
          %259 = dma.done %s252, 256
        $region48: #{tpu_custom_call.1} parent=43 // pred_fallthru
          _
        // Predicated region
        $region49: #{tpu_custom_call.1} parent=43 // pred_check
          %p260 = pneg %p63
        $region50: #{tpu_custom_call.1} parent=43 // pred_check_branch
          %262 = sbr.rel (%p260) target = $region52
        $region51: #{tpu_custom_call.1} parent=43 // pred_region
          %263 = dma.done [#allocation5], 384
        $region52: #{tpu_custom_call.1} parent=43 // pred_fallthru
          _
        %s264 = sand.u32 %s29, 1
        %s265 = scalar_lea.sflag [#allocation3], %s264
        %s266 = sand.u32 %s29, 1
        %s267 = smul.addr %s266, 16
        %s268 = scalar_lea.vmem [#allocation2], %s267
        %p269 = pneg %p42
        %p270 = pneg %p39
        %p271 = pneg %p63
        %p272 = pneg %p60
        %p273 = pneg %p84
        %p274 = pneg %p81
        %p275 = pneg %p105
        %p276 = pneg %p102
        %p277 = pneg %p126
        %p278 = pneg %p123
        %p279 = pneg %p147
        %p280 = pneg %p144
        %p281 = pneg %p173
        %p282 = pneg %p170
        %s283 = sand.u32 %s160, 1
        %s284 = sand.u32 %s160, 1
        %s285 = smul.addr %s284, 16
        %s286 = scalar_lea.vmem [#allocation6], %s285
        %s287 = smul.u32 2, %s21
        %s288 = ssub.s32 3, %s287
        %p289 = scmp.lt.s32.totalorder %s288, 2
        %s290 = scalar_select %p289, %s288, 2
        %s291 = smul.u32 128, %s290
        %s292 = smul.u32 2, %s21
        %s293 = ssub.s32 3, %s292
        %p294 = scmp.lt.s32.totalorder %s293, 2
        %s295 = scalar_select %p294, %s293, 2
        %s296 = smul.u32 128, %s295
        %v297 = vlaneseq
        %v298 = vand.u32 %v297, 127
        %vm299 = vcmp.lt.s32.totalorder %v298, 32
        %v300 = vld [vmem:[%s255] sm:$0xff]
        %v301 = vld [vmem:[%s255 + $0x8] sm:$0xff]
        %v302 = vld [vmem:[#allocation4] sm:$0xff]
        %v303 = vld [vmem:[#allocation4 + $0x8] sm:$0xff]
        %v304 = vld [vmem:[#allocation4 + $0x10] sm:$0xff]
        %v305 = vld [vmem:[%s4] sm:$0x1]
        %v306 = vld [vmem:[%s4 + $0x1] sm:$0x1]
        %v307 = vld [vmem:[%s4 + $0x2] sm:$0x1]
        %v308 = vlaneseq
        %v309 = vshrl.u32 %v308, 7
        %v310 = vsub.s32 0, %v309
        %v311 = vrot.slane %v305, %v310
        %vm312 = vcmask 195584
        %v314 = vsel %vm312, %v300, 0
        %v317 = vsel %vm312, %v301, 0
        %319 = vmatprep.subr.mxu0 0.0
        %320 = vmatpush1.msra.mxu0 0.0
        %321 = vmatprep.subr.mxu0 0.0
        %322 = vmatpush1.msra.mxu0 0.0
        %323 = vmatprep.subr.mxu0 0.0
        %324 = vmatpush1.msra.mxu0 0.0
        %325 = vmatprep.subr.mxu0 0.0
        %326 = vmatpush1.msra.mxu0 0.0
        %327 = vmatprep.subr.mxu0 0.0
        %328 = vmatpush1.msra.mxu0 0.0
        %329 = vmatprep.subr.mxu0 0.0
        %330 = vmatpush1.msra.mxu0 0.0
        %331 = vmatprep.subr.mxu0 0.0
        %332 = vmatpush1.msra.mxu0 0.0
        %333 = vmatprep.subr.mxu0 0.0
        %334 = vmatpush1.msra.mxu0 0.0
        %335 = vmatprep.subr.mxu0 0.0
        %336 = vmatpush1.msra.mxu0 0.0
        %337 = vmatprep.subr.mxu0 0.0
        %338 = vmatpush1.msra.mxu0 0.0
        %339 = vmatprep.subr.mxu0 0.0
        %340 = vmatpush1.msra.mxu0 0.0
        %341 = vmatprep.subr.mxu0 0.0
        %342 = vmatpush1.msra.mxu0 0.0
        %343 = vmatprep.subr.mxu0 0.0
        %344 = vmatpush1.msra.mxu0 0.0
        %345 = vmatprep.subr.mxu0 0.0
        %346 = vmatpush1.msra.mxu0 %v304
        %347 = vmatprep.subr.mxu0 0.0
        %348 = vmatpush1.msra.mxu0 %v303
        %349 = vmatprep.subr.mxu0 0.0
        %350 = vmatpush1.msra.mxu0 %v302
        %351 = vmatprep.subr.mxu0 0.0
        %352 = vmatpush2.msra.mxu0 0.0
        %353 = vmatprep.subr.mxu0 0.0
        %354 = vmatpush2.msra.mxu0 0.0
        %355 = vmatprep.subr.mxu0 0.0
        %356 = vmatpush2.msra.mxu0 0.0
        %357 = vmatprep.subr.mxu0 0.0
        %358 = vmatpush2.msra.mxu0 0.0
        %359 = vmatprep.subr.mxu0 0.0
        %360 = vmatpush2.msra.mxu0 0.0
        %361 = vmatprep.subr.mxu0 0.0
        %362 = vmatpush2.msra.mxu0 0.0
        %363 = vmatprep.subr.mxu0 0.0
        %364 = vmatpush2.msra.mxu0 0.0
        %365 = vmatprep.subr.mxu0 0.0
        %366 = vmatpush2.msra.mxu0 0.0
        %367 = vmatprep.subr.mxu0 0.0
        %368 = vmatpush2.msra.mxu0 0.0
        %369 = vmatprep.subr.mxu0 0.0
        %370 = vmatpush2.msra.mxu0 0.0
        %371 = vmatprep.subr.mxu0 0.0
        %372 = vmatpush2.msra.mxu0 0.0
        %373 = vmatprep.subr.mxu0 0.0
        %374 = vmatpush2.msra.mxu0 0.0
        %375 = vmatprep.subr.mxu0 0.0
        %376 = vmatpush2.msra.mxu0 0.0
        %377 = vmatprep.subr.mxu0 0.0
        %378 = vmatpush2.msra.mxu0 0.0
        %379 = vmatprep.subr.mxu0 0.0
        %380 = vmatpush2.msra.mxu0 0.0
        %381 = vmatprep.subr.mxu0 0.0
        %382 = vmatpush2.msra.mxu0 0.0
        %383 = vmatprep.mubr.f32.mxu0 0.0
        %384 = vmatmul.mubr.f32.gmra.mxu0 %v314
        %v385 = vpop.f32.mrf.mxu0
        %v386 = vadd.f32 %v311, %v385
        %v387 = vpop.f32.mrf.mxu0
        %388 = vmatprep.mubr.f32.mxu0 0.0
        %389 = vmatmul.mubr.f32.gmra.mxu0 %v317
        %v390 = vpop.f32.mrf.mxu0
        %v391 = vadd.f32 %v311, %v390
        %v392 = vpop.f32.mrf.mxu0
        %393 = vdwg.mxu0
        %394 = vadd.xlane.f32.xlu0 %v386
        %v395 = vpop.xlane.xlu0 %394
        %396 = vadd.xlane.f32.xlu0 %v391
        %v397 = vpop.xlane.xlu0 %396
        %v398 = vmul.f32 %v395, 0.03125
        %v399 = vmul.f32 %v397, 0.03125
        %v400 = vsub.f32 %v386, %v398
        %v401 = vsub.f32 %v391, %v399
        %v402 = vsel %vm299, 1, 0
        %vm403 = vcmp.eq.s32.totalorder %v402, 1
        %v404 = vsel %vm403, %v400, 0.0
        %v405 = vsel %vm403, %v401, 0.0
        %v406 = vmul.f32 %v404, %v404
        %v407 = vmul.f32 %v405, %v405
        %408 = vadd.xlane.f32.xlu0 %v406
        %v409 = vpop.xlane.xlu0 %408
        %410 = vadd.xlane.f32.xlu0 %v407
        %v411 = vpop.xlane.xlu0 %410
        %v412 = vmul.f32 %v409, 0.03125
        %v413 = vmul.f32 %v411, 0.03125
        %v414 = vadd.f32 %v412, 1e-05
        %v415 = vadd.f32 %v413, 1e-05
        %v416 = vrsqrt.pop %v414
        %v417 = vrsqrt.pop %v415
        %v418 = vmul.f32 %v404, %v416
        %v419 = vmul.f32 %v405, %v417
        %v420 = vlaneseq
        %v421 = vshrl.u32 %v420, 7
        %v422 = vsub.s32 0, %v421
        %v423 = vrot.slane %v306, %v422
        %v424 = vmul.f32 %v418, %v423
        %v425 = vmul.f32 %v419, %v423
        %v426 = vlaneseq
        %v427 = vshrl.u32 %v426, 7
        %v428 = vsub.s32 0, %v427
        %v429 = vrot.slane %v307, %v428
        %v430 = vadd.f32 %v424, %v429
        %v431 = vadd.f32 %v425, %v429
        %v432 = vmul.f32 %v430, 0.5
        %v433 = vmul.f32 %v431, 0.5
        %v434 = vtanh.pop %v432
        %v435 = vtanh.pop %v433
        %v436 = vmul.f32 %v434, 0.5
        %v437 = vmul.f32 %v435, 0.5
        %v438 = vadd.f32 %v436, 0.5
        %v439 = vadd.f32 %v437, 0.5
        %v440 = vmul.f32 %v430, %v438
        %v441 = vmul.f32 %v431, %v439
        %v442 = vld [vmem:[%s2] sm:$0xff]
        %v443 = vld [vmem:[%s2 + $0x8] sm:$0xff]
        %v444 = vld [vmem:[%s2 + $0x10] sm:$0xff]
        %v445 = vld [vmem:[%s2 + $0x18] sm:$0xff]
        %v446 = vld [vmem:[%s2 + $0x20] sm:$0xff]
        %v447 = vld [vmem:[%s2 + $0x28] sm:$0xff]
        %v448 = vld [vmem:[%s2 + $0x30] sm:$0xff]
        %v449 = vld [vmem:[%s2 + $0x38] sm:$0xff]
        %v450 = vld [vmem:[%s2 + $0x40] sm:$0xff]
        %v451 = vld [vmem:[%s2 + $0x48] sm:$0xff]
        %v452 = vld [vmem:[%s2 + $0x50] sm:$0xff]
        %v453 = vld [vmem:[%s2 + $0x58] sm:$0xff]
        %v454 = vld [vmem:[%s2 + $0x60] sm:$0xff]
        %v455 = vld [vmem:[%s2 + $0x68] sm:$0xff]
        %v456 = vld [vmem:[%s2 + $0x70] sm:$0xff]
        %v457 = vld [vmem:[%s2 + $0x78] sm:$0xff]
        %v458 = vld [vmem:[%s4 + $0x3] sm:$0x1]
        %v459 = vld [vmem:[%s4 + $0x4] sm:$0x1]
        %v460 = vld [vmem:[%s4 + $0x5] sm:$0x1]
        %v461 = vlaneseq
        %v462 = vshrl.u32 %v461, 7
        %v463 = vsub.s32 0, %v462
        %v464 = vrot.slane %v458, %v463
        %465 = vmatprep.subr.mxu0 0.0
        %466 = vmatpush1.msra.mxu0 %v457
        %467 = vmatprep.subr.mxu0 0.0
        %468 = vmatpush1.msra.mxu0 %v456
        %469 = vmatprep.subr.mxu0 0.0
        %470 = vmatpush1.msra.mxu0 %v455
        %471 = vmatprep.subr.mxu0 0.0
        %472 = vmatpush1.msra.mxu0 %v454
        %473 = vmatprep.subr.mxu0 0.0
        %474 = vmatpush1.msra.mxu0 %v453
        %475 = vmatprep.subr.mxu0 0.0
        %476 = vmatpush1.msra.mxu0 %v452
        %477 = vmatprep.subr.mxu0 0.0
        %478 = vmatpush1.msra.mxu0 %v451
        %479 = vmatprep.subr.mxu0 0.0
        %480 = vmatpush1.msra.mxu0 %v450
        %481 = vmatprep.subr.mxu0 0.0
        %482 = vmatpush1.msra.mxu0 %v449
        %483 = vmatprep.subr.mxu0 0.0
        %484 = vmatpush1.msra.mxu0 %v448
        %485 = vmatprep.subr.mxu0 0.0
        %486 = vmatpush1.msra.mxu0 %v447
        %487 = vmatprep.subr.mxu0 0.0
        %488 = vmatpush1.msra.mxu0 %v446
        %489 = vmatprep.subr.mxu0 0.0
        %490 = vmatpush1.msra.mxu0 %v445
        %491 = vmatprep.subr.mxu0 0.0
        %492 = vmatpush1.msra.mxu0 %v444
        %493 = vmatprep.subr.mxu0 0.0
        %494 = vmatpush1.msra.mxu0 %v443
        %495 = vmatprep.subr.mxu0 0.0
        %496 = vmatpush1.msra.mxu0 %v442
        %497 = vmatprep.subr.mxu0 0.0
        %498 = vmatpush2.msra.mxu0 0.0
        %499 = vmatprep.subr.mxu0 0.0
        %500 = vmatpush2.msra.mxu0 0.0
        %501 = vmatprep.subr.mxu0 0.0
        %502 = vmatpush2.msra.mxu0 0.0
        %503 = vmatprep.subr.mxu0 0.0
        %504 = vmatpush2.msra.mxu0 0.0
        %505 = vmatprep.subr.mxu0 0.0
        %506 = vmatpush2.msra.mxu0 0.0
        %507 = vmatprep.subr.mxu0 0.0
        %508 = vmatpush2.msra.mxu0 0.0
        %509 = vmatprep.subr.mxu0 0.0
        %510 = vmatpush2.msra.mxu0 0.0
        %511 = vmatprep.subr.mxu0 0.0
        %512 = vmatpush2.msra.mxu0 0.0
        %513 = vmatprep.subr.mxu0 0.0
        %514 = vmatpush2.msra.mxu0 0.0
        %515 = vmatprep.subr.mxu0 0.0
        %516 = vmatpush2.msra.mxu0 0.0
        %517 = vmatprep.subr.mxu0 0.0
        %518 = vmatpush2.msra.mxu0 0.0
        %519 = vmatprep.subr.mxu0 0.0
        %520 = vmatpush2.msra.mxu0 0.0
        %521 = vmatprep.subr.mxu0 0.0
        %522 = vmatpush2.msra.mxu0 0.0
        %523 = vmatprep.subr.mxu0 0.0
        %524 = vmatpush2.msra.mxu0 0.0
        %525 = vmatprep.subr.mxu0 0.0
        %526 = vmatpush2.msra.mxu0 0.0
        %527 = vmatprep.subr.mxu0 0.0
        %528 = vmatpush2.msra.mxu0 0.0
        %529 = vmatprep.mubr.f32.mxu0 0.0
        %530 = vmatmul.mubr.f32.gmra.mxu0 %v440
        %v531 = vpop.f32.mrf.mxu0
        %v532 = vadd.f32 %v464, %v531
        %v533 = vpop.f32.mrf.mxu0
        %534 = vmatprep.mubr.f32.mxu0 0.0
        %535 = vmatmul.mubr.f32.gmra.mxu0 %v441
        %v536 = vpop.f32.mrf.mxu0
        %v537 = vadd.f32 %v464, %v536
        %v538 = vpop.f32.mrf.mxu0
        %539 = vdwg.mxu0
        %540 = vadd.xlane.f32.xlu0 %v532
        %v541 = vpop.xlane.xlu0 %540
        %542 = vadd.xlane.f32.xlu0 %v537
        %v543 = vpop.xlane.xlu0 %542
        %v544 = vmul.f32 %v541, 0.03125
        %v545 = vmul.f32 %v543, 0.03125
        %v546 = vsub.f32 %v532, %v544
        %v547 = vsub.f32 %v537, %v545
        %v548 = vsel %vm403, %v546, 0.0
        %v549 = vsel %vm403, %v547, 0.0
        %v550 = vmul.f32 %v548, %v548
        %v551 = vmul.f32 %v549, %v549
        %552 = vadd.xlane.f32.xlu0 %v550
        %v553 = vpop.xlane.xlu0 %552
        %554 = vadd.xlane.f32.xlu0 %v551
        %v555 = vpop.xlane.xlu0 %554
        %v556 = vmul.f32 %v553, 0.03125
        %v557 = vmul.f32 %v555, 0.03125
        %v558 = vadd.f32 %v556, 1e-05
        %v559 = vadd.f32 %v557, 1e-05
        %v560 = vrsqrt.pop %v558
        %v561 = vrsqrt.pop %v559
        %v562 = vmul.f32 %v548, %v560
        %v563 = vmul.f32 %v549, %v561
        %v564 = vlaneseq
        %v565 = vshrl.u32 %v564, 7
        %v566 = vsub.s32 0, %v565
        %v567 = vrot.slane %v459, %v566
        %v568 = vmul.f32 %v562, %v567
        %v569 = vmul.f32 %v563, %v567
        %v570 = vlaneseq
        %v571 = vshrl.u32 %v570, 7
        %v572 = vsub.s32 0, %v571
        %v573 = vrot.slane %v460, %v572
        %v574 = vadd.f32 %v568, %v573
        %v575 = vadd.f32 %v569, %v573
        %v576 = vmul.f32 %v574, 0.5
        %v577 = vmul.f32 %v575, 0.5
        %v578 = vtanh.pop %v576
        %v579 = vtanh.pop %v577
        %v580 = vmul.f32 %v578, 0.5
        %v581 = vmul.f32 %v579, 0.5
        %v582 = vadd.f32 %v580, 0.5
        %v583 = vadd.f32 %v581, 0.5
        %v584 = vmul.f32 %v574, %v582
        %v585 = vmul.f32 %v575, %v583
        %v586 = vld [vmem:[%s3] sm:$0xff]
        %v587 = vld [vmem:[%s3 + $0x8] sm:$0xff]
        %v588 = vld [vmem:[%s3 + $0x10] sm:$0xff]
        %v589 = vld [vmem:[%s3 + $0x18] sm:$0xff]
        %v590 = vld [vmem:[%s3 + $0x20] sm:$0xff]
        %v591 = vld [vmem:[%s3 + $0x28] sm:$0xff]
        %v592 = vld [vmem:[%s3 + $0x30] sm:$0xff]
        %v593 = vld [vmem:[%s3 + $0x38] sm:$0xff]
        %v594 = vld [vmem:[%s3 + $0x40] sm:$0xff]
        %v595 = vld [vmem:[%s3 + $0x48] sm:$0xff]
        %v596 = vld [vmem:[%s3 + $0x50] sm:$0xff]
        %v597 = vld [vmem:[%s3 + $0x58] sm:$0xff]
        %v598 = vld [vmem:[%s3 + $0x60] sm:$0xff]
        %v599 = vld [vmem:[%s3 + $0x68] sm:$0xff]
        %v600 = vld [vmem:[%s3 + $0x70] sm:$0xff]
        %v601 = vld [vmem:[%s3 + $0x78] sm:$0xff]
        %v602 = vld [vmem:[%s5] sm:$0x1]
        %v604 = vlaneseq
        %v605 = vshrl.u32 %v604, 7
        %v606 = vsub.s32 0, %v605
        %v607 = vrot.slane %v602, %v606
        %609 = vmatprep.subr.mxu0 0.0
        %610 = vmatpush1.msra.mxu0 %v601
        %611 = vmatprep.subr.mxu0 0.0
        %612 = vmatpush1.msra.mxu0 %v600
        %613 = vmatprep.subr.mxu0 0.0
        %614 = vmatpush1.msra.mxu0 %v599
        %615 = vmatprep.subr.mxu0 0.0
        %616 = vmatpush1.msra.mxu0 %v598
        %617 = vmatprep.subr.mxu0 0.0
        %618 = vmatpush1.msra.mxu0 %v597
        %619 = vmatprep.subr.mxu0 0.0
        %620 = vmatpush1.msra.mxu0 %v596
        %621 = vmatprep.subr.mxu0 0.0
        %622 = vmatpush1.msra.mxu0 %v595
        %623 = vmatprep.subr.mxu0 0.0
        %624 = vmatpush1.msra.mxu0 %v594
        %625 = vmatprep.subr.mxu0 0.0
        %626 = vmatpush1.msra.mxu0 %v593
        %627 = vmatprep.subr.mxu0 0.0
        %628 = vmatpush1.msra.mxu0 %v592
        %629 = vmatprep.subr.mxu0 0.0
        %630 = vmatpush1.msra.mxu0 %v591
        %631 = vmatprep.subr.mxu0 0.0
        %632 = vmatpush1.msra.mxu0 %v590
        %633 = vmatprep.subr.mxu0 0.0
        %634 = vmatpush1.msra.mxu0 %v589
        %635 = vmatprep.subr.mxu0 0.0
        %636 = vmatpush1.msra.mxu0 %v588
        %637 = vmatprep.subr.mxu0 0.0
        %638 = vmatpush1.msra.mxu0 %v587
        %639 = vmatprep.subr.mxu0 0.0
        %640 = vmatpush1.msra.mxu0 %v586
        %641 = vmatprep.subr.mxu0 0.0
        %642 = vmatpush2.msra.mxu0 0.0
        %643 = vmatprep.subr.mxu0 0.0
        %644 = vmatpush2.msra.mxu0 0.0
        %645 = vmatprep.subr.mxu0 0.0
        %646 = vmatpush2.msra.mxu0 0.0
        %647 = vmatprep.subr.mxu0 0.0
        %648 = vmatpush2.msra.mxu0 0.0
        %649 = vmatprep.subr.mxu0 0.0
        %650 = vmatpush2.msra.mxu0 0.0
        %651 = vmatprep.subr.mxu0 0.0
        %652 = vmatpush2.msra.mxu0 0.0
        %653 = vmatprep.subr.mxu0 0.0
        %654 = vmatpush2.msra.mxu0 0.0
        %655 = vmatprep.subr.mxu0 0.0
        %656 = vmatpush2.msra.mxu0 0.0
        %657 = vmatprep.subr.mxu0 0.0
        %658 = vmatpush2.msra.mxu0 0.0
        %659 = vmatprep.subr.mxu0 0.0
        %660 = vmatpush2.msra.mxu0 0.0
        %661 = vmatprep.subr.mxu0 0.0
        %662 = vmatpush2.msra.mxu0 0.0
        %663 = vmatprep.subr.mxu0 0.0
        %664 = vmatpush2.msra.mxu0 0.0
        %665 = vmatprep.subr.mxu0 0.0
        %666 = vmatpush2.msra.mxu0 0.0
        %667 = vmatprep.subr.mxu0 0.0
        %668 = vmatpush2.msra.mxu0 0.0
        %669 = vmatprep.subr.mxu0 0.0
        %670 = vmatpush2.msra.mxu0 0.0
        %671 = vmatprep.subr.mxu0 0.0
        %672 = vmatpush2.msra.mxu0 0.0
        %673 = vmatprep.mubr.f32.mxu0 0.0
        %674 = vmatmul.mubr.f32.gmra.mxu0 %v584
        %v675 = vpop.f32.mrf.mxu0
        %v676 = vadd.f32 %v607, %v675
        %v677 = vpop.f32.mrf.mxu0
        %678 = vmatprep.mubr.f32.mxu0 0.0
        %679 = vmatmul.mubr.f32.gmra.mxu0 %v585
        %v680 = vpop.f32.mrf.mxu0
        %v681 = vadd.f32 %v607, %v680
        %v682 = vpop.f32.mrf.mxu0
        %683 = vdwg.mxu0
        %vm684 = vcmask 64512
        %685 = vst.msk [vmem:[%s286] sm:$0xff] %vm684, %v676
        %686 = vst.msk [vmem:[%s286 + $0x8] sm:$0xff] %vm684, %v681
        %s687 = sand.u32 %s160, 1
        %s688 = sand.u32 %s160, 1
        %s689 = smul.addr %s688, 16
        %s690 = scalar_lea.vmem [#allocation6], %s689
        // Predicated region
        $region53: #{tpu_custom_call.1} parent=43 // pred_check
          %p691 = pneg %p170
        $region54: #{tpu_custom_call.1} parent=43 // pred_check_branch
          %693 = sbr.rel (%p691) target = $region56
        $region55: #{tpu_custom_call.1} parent=43 // pred_region
          %s694 = smul.u32 2, %s21
          %s695 = ssub.s32 3, %s694
          %p696 = scmp.lt.s32.totalorder %s695, 2
          %s697 = scalar_select %p696, %s695, 2
          %s698 = smul.u32 128, %s697
          %p699 = scmp.ne.s32.totalorder 0, %s698
          %s700 = smul.addr %s694, 8
          %s701 = scalar_lea.vmem %s6, %s700
          // Predicated region
          $region57: #{tpu_custom_call.1} parent=55 // pred_check
            %p702 = pneg %p699
          $region58: #{tpu_custom_call.1} parent=55 // pred_check_branch
            %704 = sbr.rel (%p702) target = $region60
          $region59: #{tpu_custom_call.1} parent=55 // pred_region
            // Predicated region
            $region61: #{tpu_custom_call.1} parent=59 // pred_check
              _
            $region62: #{tpu_custom_call.1} parent=59 // pred_check_branch
              %706 = sbr.rel (0) target = $region64
            $region63: #{tpu_custom_call.1} parent=59 // pred_region
              // Predicated region
              $region83: #{tpu_custom_call.1} parent=63 // pred_check
                _
              $region84: #{tpu_custom_call.1} parent=63 // pred_check_branch
                %758 = sbr.rel (0) target = $region86
              $region85: #{tpu_custom_call.1} parent=63 // pred_region
                %s759 = sshrl.u32 %s697, 1
                // While loop
                $region87: #{tpu_custom_call.1} parent=85 // loop_pre_header
                  _
                $region88: #{tpu_custom_call.1} parent=85 // loop_header
                  %s761 = sphi 0, %s763
                  %p762 = scmp.ge.s32.totalorder %s761, %s759
                  %s766 = sphi 0, %s775
                  %s767 = sphi %s690, %s778
                  %s768 = sphi %s701, %s779
                $region89: #{tpu_custom_call.1} parent=85 // loop_header_branch
                  %765 = sbr.rel (%p762) target = $region93
                $region90: #{tpu_custom_call.1} parent=85 // loop_body
                  %v769 = vld [vmem:[%s767] sm:$0xff]
                  %770 = vst [vmem:[%s768] sm:$0xff] %v769
                  %v771 = vld [vmem:[%s767 + $0x8] sm:$0xff]
                  %772 = vst [vmem:[%s768 + $0x8] sm:$0xff] %v771
                  %s773 = sadd.s32 1, %s766
                  %p774 = scmp.ge.s32.totalorder %s773, %s759
                  %s775 = scalar_select %p774, 0, %s773
                  %s776 = smul.u32 %s775, 16
                  %s777 = smul.u32 %s775, 16
                  %s778 = scalar_lea.vmem %s690, %s776 [#allocation6]
                  %s779 = scalar_lea.vmem %s701, %s777
                $region91: #{tpu_custom_call.1} parent=85 // loop_footer
                  %s763 = sadd.s32 %s761, 1
                $region92: #{tpu_custom_call.1} parent=85 // loop_footer_branch
                  %760 = sbr.rel target = $region88
                $region93: #{tpu_custom_call.1} parent=85 // loop_exit
                  _
                %s780 = sshrl.u32 %s697, 1
                %s781 = sand.u32 %s697, 1
                %s782 = smul.u32 %s780, 2
                %s783 = smul.u32 8, %s782
                %s784 = scalar_lea.vmem %s690, %s783 [#allocation6]
                %s785 = smul.u32 8, %s782
                %s786 = scalar_lea.vmem %s701, %s785
                // While loop
                $region94: #{tpu_custom_call.1} parent=85 // loop_pre_header
                  _
                $region95: #{tpu_custom_call.1} parent=85 // loop_header
                  %s788 = sphi 0, %s790
                  %p789 = scmp.ge.s32.totalorder %s788, %s781
                  %s793 = sphi 0, %s800
                  %s794 = sphi %s784, %s803
                  %s795 = sphi %s786, %s804
                $region96: #{tpu_custom_call.1} parent=85 // loop_header_branch
                  %792 = sbr.rel (%p789) target = $region100
                $region97: #{tpu_custom_call.1} parent=85 // loop_body
                  %v796 = vld [vmem:[%s794] sm:$0xff]
                  %797 = vst [vmem:[%s795] sm:$0xff] %v796
                  %s798 = sadd.s32 1, %s793
                  %p799 = scmp.ge.s32.totalorder %s798, %s781
                  %s800 = scalar_select %p799, 0, %s798
                  %s801 = smul.u32 %s800, 8
                  %s802 = smul.u32 %s800, 8
                  %s803 = scalar_lea.vmem %s784, %s801 [#allocation6]
                  %s804 = scalar_lea.vmem %s786, %s802
                $region98: #{tpu_custom_call.1} parent=85 // loop_footer
                  %s790 = sadd.s32 %s788, 1
                $region99: #{tpu_custom_call.1} parent=85 // loop_footer_branch
                  %787 = sbr.rel target = $region95
                $region100: #{tpu_custom_call.1} parent=85 // loop_exit
                  _
              $region86: #{tpu_custom_call.1} parent=63 // pred_fallthru
                _
              // Predicated region
              $region101: #{tpu_custom_call.1} parent=63 // pred_check
                _
              $region102: #{tpu_custom_call.1} parent=63 // pred_check_branch
                %806 = sbr.rel target = $region104
              $region103: #{tpu_custom_call.1} parent=63 // pred_region
                _
              $region104: #{tpu_custom_call.1} parent=63 // pred_fallthru
                _
            $region64: #{tpu_custom_call.1} parent=59 // pred_fallthru
              _
            // Predicated region
            $region65: #{tpu_custom_call.1} parent=59 // pred_check
              _
            $region66: #{tpu_custom_call.1} parent=59 // pred_check_branch
              %708 = sbr.rel target = $region68
            $region67: #{tpu_custom_call.1} parent=59 // pred_region
              %s710 = ssub.s32 256, 1
              %s711 = sshrl.u32 %s697, 1
              // While loop
              $region69: #{tpu_custom_call.1} parent=67 // loop_pre_header
                _
              $region70: #{tpu_custom_call.1} parent=67 // loop_header
                %s713 = sphi 0, %s715
                %p714 = scmp.ge.s32.totalorder %s713, %s711
                %s718 = sphi 0, %s727
                %s719 = sphi %s690, %s730
                %s720 = sphi %s701, %s731
              $region71: #{tpu_custom_call.1} parent=67 // loop_header_branch
                %717 = sbr.rel (%p714) target = $region75
              $region72: #{tpu_custom_call.1} parent=67 // loop_body
                %v721 = vld [vmem:[%s719] sm:%s710]
                %722 = vst [vmem:[%s720] sm:%s710] %v721
                %v723 = vld [vmem:[%s719 + $0x8] sm:%s710]
                %724 = vst [vmem:[%s720 + $0x8] sm:%s710] %v723
                %s725 = sadd.s32 1, %s718
                %p726 = scmp.ge.s32.totalorder %s725, %s711
                %s727 = scalar_select %p726, 0, %s725
                %s728 = smul.u32 %s727, 16
                %s729 = smul.u32 %s727, 16
                %s730 = scalar_lea.vmem %s690, %s728 [#allocation6]
                %s731 = scalar_lea.vmem %s701, %s729
              $region73: #{tpu_custom_call.1} parent=67 // loop_footer
                %s715 = sadd.s32 %s713, 1
              $region74: #{tpu_custom_call.1} parent=67 // loop_footer_branch
                %712 = sbr.rel target = $region70
              $region75: #{tpu_custom_call.1} parent=67 // loop_exit
                _
              %s732 = sshrl.u32 %s697, 1
              %s733 = sand.u32 %s697, 1
              %s734 = smul.u32 %s732, 2
              %s735 = smul.u32 8, %s734
              %s736 = scalar_lea.vmem %s690, %s735 [#allocation6]
              %s737 = smul.u32 8, %s734
              %s738 = scalar_lea.vmem %s701, %s737
              // While loop
              $region76: #{tpu_custom_call.1} parent=67 // loop_pre_header
                _
              $region77: #{tpu_custom_call.1} parent=67 // loop_header
                %s740 = sphi 0, %s742
                %p741 = scmp.ge.s32.totalorder %s740, %s733
                %s745 = sphi 0, %s752
                %s746 = sphi %s736, %s755
                %s747 = sphi %s738, %s756
              $region78: #{tpu_custom_call.1} parent=67 // loop_header_branch
                %744 = sbr.rel (%p741) target = $region82
              $region79: #{tpu_custom_call.1} parent=67 // loop_body
                %v748 = vld [vmem:[%s746] sm:%s710]
                %749 = vst [vmem:[%s747] sm:%s710] %v748
                %s750 = sadd.s32 1, %s745
                %p751 = scmp.ge.s32.totalorder %s750, %s733
                %s752 = scalar_select %p751, 0, %s750
                %s753 = smul.u32 %s752, 8
                %s754 = smul.u32 %s752, 8
                %s755 = scalar_lea.vmem %s736, %s753 [#allocation6]
                %s756 = scalar_lea.vmem %s738, %s754
              $region80: #{tpu_custom_call.1} parent=67 // loop_footer
                %s742 = sadd.s32 %s740, 1
              $region81: #{tpu_custom_call.1} parent=67 // loop_footer_branch
                %739 = sbr.rel target = $region77
              $region82: #{tpu_custom_call.1} parent=67 // loop_exit
                _
            $region68: #{tpu_custom_call.1} parent=59 // pred_fallthru
              _
          $region60: #{tpu_custom_call.1} parent=55 // pred_fallthru
            _
          %807 = vnop
        $region56: #{tpu_custom_call.1} parent=43 // pred_fallthru
          _
      $region44: #{tpu_custom_call.1} parent=5 // pred_fallthru
        _
      %p808 = scmp.le.s32.totalorder 2, %s16
      // Predicated region
      $region105: #{tpu_custom_call.1} parent=5 // pred_check
        %p809 = pneg %p808
      $region106: #{tpu_custom_call.1} parent=5 // pred_check_branch
        %811 = sbr.rel (%p809) target = $region108
      $region107: #{tpu_custom_call.1} parent=5 // pred_region
        %s812 = ssub.s32 %s16, 2
        // Predicated region
        $region109: #{tpu_custom_call.1} parent=107 // pred_check
          %p813 = pneg %p176
        $region110: #{tpu_custom_call.1} parent=107 // pred_check_branch
          %815 = sbr.rel (%p813) target = $region112
        $region111: #{tpu_custom_call.1} parent=107 // pred_region
          %s816 = sand.u32 %s161, 1
          %s817 = sand.u32 %s161, 1
          %s818 = smul.addr %s817, 16
          %s819 = scalar_lea.vmem [#allocation6], %s818
        $region112: #{tpu_custom_call.1} parent=107 // pred_fallthru
          _
      $region108: #{tpu_custom_call.1} parent=5 // pred_fallthru
        _
    $region6: #{tpu_custom_call.1} parent=1 // loop_footer
      %s20 = sadd.s32 1, %s16
    $region7: #{tpu_custom_call.1} parent=1 // loop_footer_branch
      %15 = sbr.rel target = $region3
    $region8: #{tpu_custom_call.1} parent=1 // loop_exit
      _
    %820 = vsyncpa [#allocation3], 1
    %s821 = scalar_lea.sflag [#allocation3], 1
    %822 = vsyncpa %s821, 1
    %823 = vsyncpa [#allocation5], 1

</llo_original>
